<compile_context>
chip_gen: v5e
topology: v5e:2x2
jax: 0.10.0
libtpu: 0.0.40
codegen_flags: <defaults>
</compile_context>

<pallas_src>
import functools

import jax
import jax.numpy as jnp
from jax import lax
from jax.experimental import pallas as pl
from jax.experimental.pallas import tpu as pltpu


# Taps for ConvTranspose2d(k=4, stride=2, padding=1), per output parity:
#   output row 2h   <- input rows h-1 (kh=3) and h   (kh=1)
#   output row 2h+1 <- input rows h   (kh=2) and h+1 (kh=0)
# `offset` indexes the (TH+2)-row halo window (rows) / the (W+2)-col padded z (cols).
_TAPS = {0: ((0, 3), (1, 1)), 1: ((1, 2), (2, 0))}


def _decoder_block_kernel(x_ref, w1_ref, w2_ref, w3_ref, b1_ref, b3_ref, *rest,
                          TH, H, W, Cin, Cout, has_skip):
    if has_skip:
        skip_ref, o_ref = rest
    else:
        (o_ref,) = rest

    r = pl.program_id(1)
    h0 = pl.multiple_of(r * TH, TH)          # window start (padded-H coordinates)

    # ---- conv1 (1x1) + BN1 on TH+2 input rows (1-row halo each side) ---------
    xs = x_ref[0, pl.ds(h0, TH + 2)]                         # (TH+2, W, Cin) bf16
    xs = xs.reshape((TH + 2) * W, Cin)
    y1 = jnp.dot(xs, w1_ref[...], preferred_element_type=jnp.float32)
    # Add the conv1/BN1 shift only on real rows: the zero halo rows (padded rows
    # 0 and H+1) must contribute exactly zero to the transposed conv.
    prow = lax.broadcasted_iota(jnp.int32, (TH + 2, W, 1), 0) + h0
    valid = jnp.logical_and(prow >= 1, prow <= H).astype(jnp.float32)
    y1 = y1 + b1_ref[...] * valid.reshape((TH + 2) * W, 1)   # ((TH+2)*W, mid) f32

    # ---- ConvTranspose2d(4, s=2, p=1) + BN2: subpixel matmul, stays in VMEM ---
    z = jnp.dot(y1.astype(jnp.bfloat16), w2_ref[...],
                preferred_element_type=jnp.float32)          # ((TH+2)*W, 16*Cout) f32
    z = z.reshape(TH + 2, W, 16 * Cout)
    zcol = jnp.zeros((TH + 2, 1, 16 * Cout), jnp.float32)
    zp = jnp.concatenate([zcol, z, zcol], axis=1)            # zero halo columns

    # ---- col2im overlap-add (f32) + conv3 (1x1) + BN3 (+ skip), per phase -----
    w3 = w3_ref[...]
    b3 = b3_ref[...]
    for rp in (0, 1):
        for cp in (0, 1):
            acc = None
            for ro, kh in _TAPS[rp]:
                for co, kw in _TAPS[cp]:
                    c0 = (kh * 4 + kw) * Cout
                    term = zp[ro:ro + TH, co:co + W, c0:c0 + Cout]    # f32
                    acc = term if acc is None else acc + term
            y2 = acc.reshape(TH * W, Cout)                            # f32
            y3 = jnp.dot(y2.astype(jnp.bfloat16), w3,
                         preferred_element_type=jnp.float32) + b3
            p = 2 * rp + cp
            if has_skip:
                y3 = y3 + skip_ref[0, p]
            o_ref[0, p] = y3.astype(o_ref.dtype)


# -----------------------------------------------------------------------------
# Trace-time helpers
# -----------------------------------------------------------------------------
def _fold_bn(bias, bn, eps=1e-5):
    """Fold conv bias + inference BatchNorm into per-channel (scale, shift)."""
    scale = bn["gamma"] * lax.rsqrt(bn["var"] + eps)
    shift = (bias - bn["mean"]) * scale + bn["beta"]
    return scale, shift


def _pick_th(H, W, Cout):
    """Input-row block size: divisor of H, lane/sublane-friendly ((TH*W) % 8 == 0
    or full), per-block f32 subpixel tensor <= ~4 MiB, and prefer >= 2 row blocks
    so both TensorCores always have parallel work."""
    budget = 4 * 1024 * 1024
    divs = [t for t in range(1, H + 1)
            if H % t == 0 and ((t * W) % 8 == 0 or t == H)]
    under = [t for t in divs if (t + 2) * (W + 2) * 16 * Cout * 4 <= budget]
    pref = [t for t in under if t <= H // 2] or under or divs[:1]
    return max(pref)


def _vmem_limit_bytes():
    try:
        cap = pltpu.get_tpu_info().vmem_capacity_bytes
    except Exception:
        cap = 64 * 1024 * 1024
    # ~48 MiB on v7x (64 MiB physical), ~96 MiB on v5e/v6e (128 MiB physical).
    return int(min(cap * 3 // 4, 96 * 1024 * 1024))


# -----------------------------------------------------------------------------
# DecoderBlock forward (NCHW in / NCHW out, like the PyTorch module)
# -----------------------------------------------------------------------------
def decoder_block_forward(params, x_nchw, skip_nchw=None):
    B, Cin, H, W = x_nchw.shape
    mid = params["conv1_w"].shape[0]
    Cout = params["conv3_w"].shape[0]

    # NCHW -> NHWC, bf16 at the boundary, plus the 1-row zero halo for the
    # transposed conv's overlap-add.  One fused XLA pass over x.
    x = jnp.transpose(x_nchw, (0, 2, 3, 1)).astype(jnp.bfloat16)
    x = jnp.pad(x, ((0, 0), (1, 1), (0, 0), (0, 0)))          # (B, H+2, W, Cin)

    # Fold conv biases + inference BN into bf16 weights / f32 shifts (trace time).
    s1, b1 = _fold_bn(params["conv1_b"], params["bn1"])
    w1 = (params["conv1_w"][:, :, 0, 0].T * s1[None, :]).astype(jnp.bfloat16)
    s2, b2 = _fold_bn(params["deconv_b"], params["bn2"])
    w2 = jnp.transpose(params["deconv_w"], (0, 2, 3, 1)) * s2  # (mid, 4, 4, Cout)
    w2 = w2.reshape(mid, 16 * Cout).astype(jnp.bfloat16)
    s3, b3 = _fold_bn(params["conv3_b"], params["bn3"])
    w3f = params["conv3_w"][:, :, 0, 0].T * s3[None, :]        # (Cout, Cout)
    # The deconv/BN2 shift is a uniform per-channel constant -> fold it through
    # the 1x1 conv3 (valid because there is no nonlinearity in between).
    b3_eff = (b3 + b2 @ w3f).reshape(1, Cout).astype(jnp.float32)
    w3 = w3f.astype(jnp.bfloat16)
    b1 = b1.reshape(1, mid).astype(jnp.float32)

    TH = _pick_th(H, W, Cout)
    n_rb = H // TH

    inputs = [x, w1, w2, w3, b1, b3_eff]
    in_specs = [
        # per-image input, resident across the row-block axis
        pl.BlockSpec((1, H + 2, W, Cin), lambda b, r: (b, 0, 0, 0)),
        # folded weights / shifts: fully VMEM-resident
        pl.BlockSpec((Cin, mid), lambda b, r: (0, 0)),
        pl.BlockSpec((mid, 16 * Cout), lambda b, r: (0, 0)),
        pl.BlockSpec((Cout, Cout), lambda b, r: (0, 0)),
        pl.BlockSpec((1, mid), lambda b, r: (0, 0)),
        pl.BlockSpec((1, Cout), lambda b, r: (0, 0)),
    ]
    has_skip = skip_nchw is not None
    if has_skip:
        # Phase-separated skip: (B, (rp,cp), H*W, Cout), one XLA pass (the same
        # cost as the NCHW->NHWC transpose it replaces).
        sk = skip_nchw.reshape(B, Cout, H, 2, W, 2)
        sk = jnp.transpose(sk, (0, 3, 5, 2, 4, 1)).reshape(B, 4, H * W, Cout)
        inputs.append(sk.astype(jnp.float32))
        in_specs.append(pl.BlockSpec((1, 4, TH * W, Cout), lambda b, r: (b, 0, r, 0)))

    out = pl.pallas_call(
        functools.partial(_decoder_block_kernel, TH=TH, H=H, W=W, Cin=Cin,
                          Cout=Cout, has_skip=has_skip),
        out_shape=jax.ShapeDtypeStruct((B, 4, H * W, Cout), jnp.float32),
        grid=(B, n_rb),
        in_specs=in_specs,
        out_specs=pl.BlockSpec((1, 4, TH * W, Cout), lambda b, r: (b, 0, r, 0)),
        compiler_params=pltpu.CompilerParams(
            dimension_semantics=("parallel", "parallel"),
            vmem_limit_bytes=_vmem_limit_bytes(),
        ),
    )(*inputs)

    # Phase-separated (B, (rp,cp), H*W, Cout) -> NCHW (B, Cout, 2H, 2W).
    # Single XLA transpose pass -- it replaces the NHWC->NCHW transpose that
    # would have been needed anyway.
    y = out.reshape(B, 2, 2, H, W, Cout)
    y = jnp.transpose(y, (0, 5, 3, 1, 4, 2))                  # (B, C, H, rp, W, cp)
    return y.reshape(B, Cout, 2 * H, 2 * W)


# -----------------------------------------------------------------------------
# Deterministic synthetic parameters (PyTorch layouts)
# -----------------------------------------------------------------------------
def build_decoder_params(key, in_channels, out_channels):
    mid = in_channels // 4
    ks = jax.random.split(key, 9)

    def conv_w(k, o, i, kh, kw):
        fan_in = i * kh * kw
        return jax.random.normal(k, (o, i, kh, kw), jnp.float32) * jnp.sqrt(2.0 / fan_in)

    def conv_t_w(k, i, o, kh, kw):
        fan_in = o * kh * kw
        return jax.random.normal(k, (i, o, kh, kw), jnp.float32) * jnp.sqrt(2.0 / fan_in)

    def vec(k, c, s=0.05):
        return jax.random.normal(k, (c,), jnp.float32) * s

    def bn(k, c):
        k1, k2, k3, k4 = jax.random.split(k, 4)
        return dict(
            gamma=jax.random.uniform(k1, (c,), jnp.float32, 0.5, 1.5),
            beta=jax.random.normal(k2, (c,), jnp.float32) * 0.1,
            mean=jax.random.normal(k3, (c,), jnp.float32) * 0.1,
            var=jax.random.uniform(k4, (c,), jnp.float32, 0.5, 1.5),
        )

    return dict(
        conv1_w=conv_w(ks[0], mid, in_channels, 1, 1), conv1_b=vec(ks[1], mid),
        bn1=bn(ks[2], mid),
        deconv_w=conv_t_w(ks[3], mid, out_channels, 4, 4), deconv_b=vec(ks[4], out_channels),
        bn2=bn(ks[5], out_channels),
        conv3_w=conv_w(ks[6], out_channels, out_channels, 1, 1), conv3_b=vec(ks[7], out_channels),
        bn3=bn(ks[8], out_channels),
    )


# -----------------------------------------------------------------------------
# Plain-JAX reference (XLA convs) for correctness checking
# -----------------------------------------------------------------------------
def _bn_inference(x, bn, eps=1e-5):
    return (x - bn["mean"]) * (bn["gamma"] * lax.rsqrt(bn["var"] + eps)) + bn["beta"]


def decoder_block_reference(params, x_nchw, skip_nchw=None):
    x = jnp.transpose(x_nchw, (0, 2, 3, 1))
    dn = ("NHWC", "HWIO", "NHWC")

    w1 = jnp.transpose(params["conv1_w"], (2, 3, 1, 0))
    y = lax.conv_general_dilated(x, w1, (1, 1), [(0, 0), (0, 0)], dimension_numbers=dn)
    y = _bn_inference(y + params["conv1_b"], params["bn1"])

    wt = jnp.transpose(jnp.flip(params["deconv_w"], (2, 3)), (2, 3, 0, 1))
    y = lax.conv_general_dilated(y, wt, (1, 1), [(2, 2), (2, 2)],
                                 lhs_dilation=(2, 2), dimension_numbers=dn)
    y = _bn_inference(y + params["deconv_b"], params["bn2"])

    w3 = jnp.transpose(params["conv3_w"], (2, 3, 1, 0))
    y = lax.conv_general_dilated(y, w3, (1, 1), [(0, 0), (0, 0)], dimension_numbers=dn)
    y = _bn_inference(y + params["conv3_b"], params["bn3"])

    if skip_nchw is not None:
        y = y + jnp.transpose(skip_nchw, (0, 2, 3, 1))
    return jnp.transpose(y, (0, 3, 1, 2))


# -----------------------------------------------------------------------------
if __name__ == "__main__":
    key = jax.random.PRNGKey(0)
    kp, kx, ks = jax.random.split(key, 3)

    in_channels, out_channels = 64, 32
    B, H, W = 2, 8, 8

    params = build_decoder_params(kp, in_channels, out_channels)
    x = jax.random.normal(kx, (B, in_channels, H, W), jnp.float32)          # NCHW
    skip = jax.random.normal(ks, (B, out_channels, 2 * H, 2 * W), jnp.float32)

    fwd = jax.jit(decoder_block_forward)
    out = jax.block_until_ready(fwd(params, x, skip))
    out_noskip = jax.block_until_ready(fwd(params, x, None))

    ref = decoder_block_reference(params, x, skip)
    ref_noskip = decoder_block_reference(params, x, None)

    assert out.shape == (B, out_channels, 2 * H, 2 * W), out.shape
    assert bool(jnp.all(jnp.isfinite(out)))

    def rel_err(a, b):
        return float(jnp.max(jnp.abs(a - b)) / (jnp.max(jnp.abs(b)) + 1e-6))

    assert rel_err(out, ref) < 0.1, rel_err(out, ref)                 # bf16 MXU tolerance
    assert rel_err(out_noskip, ref_noskip) < 0.1, rel_err(out_noskip, ref_noskip)
    print("KERNEL_OK")
</pallas_src>

<mosaic_0001>
module attributes {stable_mosaic.version = 11 : i64} {
  func.func @_decoder_block_kernel(%arg0: i32, %arg1: i32, %arg2: memref<1x10x8x64xbf16, #tpu.memory_space<vmem>>, %arg3: memref<64x16xbf16, #tpu.memory_space<vmem>>, %arg4: memref<16x512xbf16, #tpu.memory_space<vmem>>, %arg5: memref<32x32xbf16, #tpu.memory_space<vmem>>, %arg6: memref<1x16xf32, #tpu.memory_space<vmem>>, %arg7: memref<1x32xf32, #tpu.memory_space<vmem>>, %arg8: memref<1x4x32x32xf32, #tpu.memory_space<vmem>>, %arg9: memref<1x4x32x32xf32, #tpu.memory_space<vmem>>) attributes {dimension_semantics = [#tpu.dimension_semantics<parallel>, #tpu.dimension_semantics<parallel>], iteration_bounds = array<i64: 2, 2>, scalar_prefetch = 0 : i64, scratch_operands = 0 : i64, tpu.core_type = #tpu.core_type<tc>, window_params = [{transform_indices = @transform_0, window_bounds = array<i64: 1, 10, 8, 64>}, {pipeline_mode = #tpu.pipeline_mode<synchronous>, transform_indices = @transform_1, window_bounds = array<i64: 64, 16>}, {pipeline_mode = #tpu.pipeline_mode<synchronous>, transform_indices = @transform_2, window_bounds = array<i64: 16, 512>}, {pipeline_mode = #tpu.pipeline_mode<synchronous>, transform_indices = @transform_3, window_bounds = array<i64: 32, 32>}, {pipeline_mode = #tpu.pipeline_mode<synchronous>, transform_indices = @transform_4, window_bounds = array<i64: 1, 16>}, {pipeline_mode = #tpu.pipeline_mode<synchronous>, transform_indices = @transform_5, window_bounds = array<i64: 1, 32>}, {transform_indices = @transform_6, window_bounds = array<i64: 1, 4, 32, 32>}, {transform_indices = @transform_7, window_bounds = array<i64: 1, 4, 32, 32>}]} {
    %c4_i32 = arith.constant 4 : i32
    %0 = arith.muli %arg1, %c4_i32 : i32
    %1 = tpu.assume_multiple %0, 4 : i32
    %c0 = arith.constant 0 : index
    %2 = arith.index_cast %1 : i32 to index
    %c0_0 = arith.constant 0 : index
    %c0_1 = arith.constant 0 : index
    %3 = vector.load %arg2[%c0, %2, %c0_0, %c0_1] : memref<1x10x8x64xbf16, #tpu.memory_space<vmem>>, vector<1x6x8x64xbf16>
    %4 = vector.shape_cast %3 : vector<1x6x8x64xbf16> to vector<6x8x64xbf16>
    %5 = vector.shape_cast %4 : vector<6x8x64xbf16> to vector<48x64xbf16>
    %c0_2 = arith.constant 0 : index
    %c0_3 = arith.constant 0 : index
    %6 = vector.load %arg3[%c0_2, %c0_3] : memref<64x16xbf16, #tpu.memory_space<vmem>>, vector<64x16xbf16>
    %cst = arith.constant dense<0.000000e+00> : vector<48x16xf32>
    %7 = tpu.matmul %5, %6, %cst {dimension_numbers = #tpu.dot_dimension_numbers<[1], [0], [0], [1], [0, 0, 1, 1], [], []>} : vector<48x64xbf16>, vector<64x16xbf16>, vector<48x16xf32> -> vector<48x16xf32>
    %8 = tpu.iota {dimensions = array<i32: 0>} : vector<6x8x1xi32>
    %9 = vector.broadcast %1 : i32 to vector<6x8x1xi32>
    %10 = arith.addi %8, %9 : vector<6x8x1xi32>
    %c1_i32 = arith.constant 1 : i32
    %11 = vector.broadcast %c1_i32 : i32 to vector<6x8x1xi32>
    %12 = arith.cmpi sge, %10, %11 : vector<6x8x1xi32>
    %c8_i32 = arith.constant 8 : i32
    %13 = vector.broadcast %c8_i32 : i32 to vector<6x8x1xi32>
    %14 = arith.cmpi sle, %10, %13 : vector<6x8x1xi32>
    %15 = arith.andi %12, %14 : vector<6x8x1xi1>
    %16 = arith.extui %15 : vector<6x8x1xi1> to vector<6x8x1xi32>
    %17 = arith.sitofp %16 : vector<6x8x1xi32> to vector<6x8x1xf32>
    %c0_4 = arith.constant 0 : index
    %c0_5 = arith.constant 0 : index
    %18 = vector.load %arg6[%c0_4, %c0_5] : memref<1x16xf32, #tpu.memory_space<vmem>>, vector<1x16xf32>
    %19 = vector.shape_cast %17 : vector<6x8x1xf32> to vector<48x1xf32>
    %20 = vector.broadcast %18 : vector<1x16xf32> to vector<48x16xf32>
    %21 = vector.broadcast %19 : vector<48x1xf32> to vector<48x16xf32>
    %22 = arith.mulf %20, %21 : vector<48x16xf32>
    %23 = arith.addf %7, %22 : vector<48x16xf32>
    %24 = arith.truncf %23 : vector<48x16xf32> to vector<48x16xbf16>
    %c0_6 = arith.constant 0 : index
    %c0_7 = arith.constant 0 : index
    %25 = vector.load %arg4[%c0_6, %c0_7] : memref<16x512xbf16, #tpu.memory_space<vmem>>, vector<16x512xbf16>
    %cst_8 = arith.constant dense<0.000000e+00> : vector<48x512xf32>
    %26 = tpu.matmul %24, %25, %cst_8 {dimension_numbers = #tpu.dot_dimension_numbers<[1], [0], [0], [1], [0, 0, 1, 1], [], []>} : vector<48x16xbf16>, vector<16x512xbf16>, vector<48x512xf32> -> vector<48x512xf32>
    %27 = vector.shape_cast %26 : vector<48x512xf32> to vector<6x8x512xf32>
    %cst_9 = arith.constant 0.000000e+00 : f32
    %28 = vector.broadcast %cst_9 : f32 to vector<6x1x512xf32>
    %29 = tpu.concatenate %28, %27, %28 in 1 : vector<6x1x512xf32>, vector<6x8x512xf32>, vector<6x1x512xf32> -> vector<6x10x512xf32>
    %c0_10 = arith.constant 0 : index
    %c0_11 = arith.constant 0 : index
    %30 = vector.load %arg5[%c0_10, %c0_11] : memref<32x32xbf16, #tpu.memory_space<vmem>>, vector<32x32xbf16>
    %c0_12 = arith.constant 0 : index
    %c0_13 = arith.constant 0 : index
    %31 = vector.load %arg7[%c0_12, %c0_13] : memref<1x32xf32, #tpu.memory_space<vmem>>, vector<1x32xf32>
    %32 = vector.extract_strided_slice %29 {offsets = [0, 0, 480], sizes = [4, 8, 32], strides = [1, 1, 1]} : vector<6x10x512xf32> to vector<4x8x32xf32>
    %33 = vector.extract_strided_slice %29 {offsets = [0, 1, 416], sizes = [4, 8, 32], strides = [1, 1, 1]} : vector<6x10x512xf32> to vector<4x8x32xf32>
    %34 = arith.addf %32, %33 : vector<4x8x32xf32>
    %35 = vector.extract_strided_slice %29 {offsets = [1, 0, 224], sizes = [4, 8, 32], strides = [1, 1, 1]} : vector<6x10x512xf32> to vector<4x8x32xf32>
    %36 = arith.addf %34, %35 : vector<4x8x32xf32>
    %37 = vector.extract_strided_slice %29 {offsets = [1, 1, 160], sizes = [4, 8, 32], strides = [1, 1, 1]} : vector<6x10x512xf32> to vector<4x8x32xf32>
    %38 = arith.addf %36, %37 : vector<4x8x32xf32>
    %39 = vector.shape_cast %38 : vector<4x8x32xf32> to vector<32x32xf32>
    %40 = arith.truncf %39 : vector<32x32xf32> to vector<32x32xbf16>
    %cst_14 = arith.constant dense<0.000000e+00> : vector<32x32xf32>
    %41 = tpu.matmul %40, %30, %cst_14 {dimension_numbers = #tpu.dot_dimension_numbers<[1], [0], [0], [1], [0, 0, 1, 1], [], []>} : vector<32x32xbf16>, vector<32x32xbf16>, vector<32x32xf32> -> vector<32x32xf32>
    %42 = vector.broadcast %31 : vector<1x32xf32> to vector<32x32xf32>
    %43 = arith.addf %41, %42 : vector<32x32xf32>
    %c0_15 = arith.constant 0 : index
    %c0_16 = arith.constant 0 : index
    %c0_17 = arith.constant 0 : index
    %c0_18 = arith.constant 0 : index
    %44 = vector.load %arg8[%c0_15, %c0_16, %c0_17, %c0_18] : memref<1x4x32x32xf32, #tpu.memory_space<vmem>>, vector<1x1x32x32xf32>
    %45 = vector.shape_cast %44 : vector<1x1x32x32xf32> to vector<32x32xf32>
    %46 = arith.addf %43, %45 : vector<32x32xf32>
    %c0_19 = arith.constant 0 : index
    %c0_20 = arith.constant 0 : index
    %c0_21 = arith.constant 0 : index
    %c0_22 = arith.constant 0 : index
    %47 = vector.load %arg9[%c0_19, %c0_20, %c0_21, %c0_22] : memref<1x4x32x32xf32, #tpu.memory_space<vmem>>, vector<1x1x32x32xf32>
    %48 = vector.shape_cast %47 : vector<1x1x32x32xf32> to vector<32x32xf32>
    %49 = vector.shape_cast %46 : vector<32x32xf32> to vector<1x1x32x32xf32>
    tpu.vector_store %arg9[%c0_19, %c0_20, %c0_21, %c0_22], %49 {strides = array<i32>} : memref<1x4x32x32xf32, #tpu.memory_space<vmem>>, vector<1x1x32x32xf32>,
    %50 = vector.extract_strided_slice %29 {offsets = [0, 1, 448], sizes = [4, 8, 32], strides = [1, 1, 1]} : vector<6x10x512xf32> to vector<4x8x32xf32>
    %51 = vector.extract_strided_slice %29 {offsets = [0, 2, 384], sizes = [4, 8, 32], strides = [1, 1, 1]} : vector<6x10x512xf32> to vector<4x8x32xf32>
    %52 = arith.addf %50, %51 : vector<4x8x32xf32>
    %53 = vector.extract_strided_slice %29 {offsets = [1, 1, 192], sizes = [4, 8, 32], strides = [1, 1, 1]} : vector<6x10x512xf32> to vector<4x8x32xf32>
    %54 = arith.addf %52, %53 : vector<4x8x32xf32>
    %55 = vector.extract_strided_slice %29 {offsets = [1, 2, 128], sizes = [4, 8, 32], strides = [1, 1, 1]} : vector<6x10x512xf32> to vector<4x8x32xf32>
    %56 = arith.addf %54, %55 : vector<4x8x32xf32>
    %57 = vector.shape_cast %56 : vector<4x8x32xf32> to vector<32x32xf32>
    %58 = arith.truncf %57 : vector<32x32xf32> to vector<32x32xbf16>
    %cst_23 = arith.constant dense<0.000000e+00> : vector<32x32xf32>
    %59 = tpu.matmul %58, %30, %cst_23 {dimension_numbers = #tpu.dot_dimension_numbers<[1], [0], [0], [1], [0, 0, 1, 1], [], []>} : vector<32x32xbf16>, vector<32x32xbf16>, vector<32x32xf32> -> vector<32x32xf32>
    %60 = vector.broadcast %31 : vector<1x32xf32> to vector<32x32xf32>
    %61 = arith.addf %59, %60 : vector<32x32xf32>
    %c0_24 = arith.constant 0 : index
    %c1 = arith.constant 1 : index
    %c0_25 = arith.constant 0 : index
    %c0_26 = arith.constant 0 : index
    %62 = vector.load %arg8[%c0_24, %c1, %c0_25, %c0_26] : memref<1x4x32x32xf32, #tpu.memory_space<vmem>>, vector<1x1x32x32xf32>
    %63 = vector.shape_cast %62 : vector<1x1x32x32xf32> to vector<32x32xf32>
    %64 = arith.addf %61, %63 : vector<32x32xf32>
    %c0_27 = arith.constant 0 : index
    %c1_28 = arith.constant 1 : index
    %c0_29 = arith.constant 0 : index
    %c0_30 = arith.constant 0 : index
    %65 = vector.load %arg9[%c0_27, %c1_28, %c0_29, %c0_30] : memref<1x4x32x32xf32, #tpu.memory_space<vmem>>, vector<1x1x32x32xf32>
    %66 = vector.shape_cast %65 : vector<1x1x32x32xf32> to vector<32x32xf32>
    %67 = vector.shape_cast %64 : vector<32x32xf32> to vector<1x1x32x32xf32>
    tpu.vector_store %arg9[%c0_27, %c1_28, %c0_29, %c0_30], %67 {strides = array<i32>} : memref<1x4x32x32xf32, #tpu.memory_space<vmem>>, vector<1x1x32x32xf32>,
    %68 = vector.extract_strided_slice %29 {offsets = [1, 0, 352], sizes = [4, 8, 32], strides = [1, 1, 1]} : vector<6x10x512xf32> to vector<4x8x32xf32>
    %69 = vector.extract_strided_slice %29 {offsets = [1, 1, 288], sizes = [4, 8, 32], strides = [1, 1, 1]} : vector<6x10x512xf32> to vector<4x8x32xf32>
    %70 = arith.addf %68, %69 : vector<4x8x32xf32>
    %71 = vector.extract_strided_slice %29 {offsets = [2, 0, 96], sizes = [4, 8, 32], strides = [1, 1, 1]} : vector<6x10x512xf32> to vector<4x8x32xf32>
    %72 = arith.addf %70, %71 : vector<4x8x32xf32>
    %73 = vector.extract_strided_slice %29 {offsets = [2, 1, 32], sizes = [4, 8, 32], strides = [1, 1, 1]} : vector<6x10x512xf32> to vector<4x8x32xf32>
    %74 = arith.addf %72, %73 : vector<4x8x32xf32>
    %75 = vector.shape_cast %74 : vector<4x8x32xf32> to vector<32x32xf32>
    %76 = arith.truncf %75 : vector<32x32xf32> to vector<32x32xbf16>
    %cst_31 = arith.constant dense<0.000000e+00> : vector<32x32xf32>
    %77 = tpu.matmul %76, %30, %cst_31 {dimension_numbers = #tpu.dot_dimension_numbers<[1], [0], [0], [1], [0, 0, 1, 1], [], []>} : vector<32x32xbf16>, vector<32x32xbf16>, vector<32x32xf32> -> vector<32x32xf32>
    %78 = vector.broadcast %31 : vector<1x32xf32> to vector<32x32xf32>
    %79 = arith.addf %77, %78 : vector<32x32xf32>
    %c0_32 = arith.constant 0 : index
    %c2 = arith.constant 2 : index
    %c0_33 = arith.constant 0 : index
    %c0_34 = arith.constant 0 : index
    %80 = vector.load %arg8[%c0_32, %c2, %c0_33, %c0_34] : memref<1x4x32x32xf32, #tpu.memory_space<vmem>>, vector<1x1x32x32xf32>
    %81 = vector.shape_cast %80 : vector<1x1x32x32xf32> to vector<32x32xf32>
    %82 = arith.addf %79, %81 : vector<32x32xf32>
    %c0_35 = arith.constant 0 : index
    %c2_36 = arith.constant 2 : index
    %c0_37 = arith.constant 0 : index
    %c0_38 = arith.constant 0 : index
    %83 = vector.load %arg9[%c0_35, %c2_36, %c0_37, %c0_38] : memref<1x4x32x32xf32, #tpu.memory_space<vmem>>, vector<1x1x32x32xf32>
    %84 = vector.shape_cast %83 : vector<1x1x32x32xf32> to vector<32x32xf32>
    %85 = vector.shape_cast %82 : vector<32x32xf32> to vector<1x1x32x32xf32>
    tpu.vector_store %arg9[%c0_35, %c2_36, %c0_37, %c0_38], %85 {strides = array<i32>} : memref<1x4x32x32xf32, #tpu.memory_space<vmem>>, vector<1x1x32x32xf32>,
    %86 = vector.extract_strided_slice %29 {offsets = [1, 1, 320], sizes = [4, 8, 32], strides = [1, 1, 1]} : vector<6x10x512xf32> to vector<4x8x32xf32>
    %87 = vector.extract_strided_slice %29 {offsets = [1, 2, 256], sizes = [4, 8, 32], strides = [1, 1, 1]} : vector<6x10x512xf32> to vector<4x8x32xf32>
    %88 = arith.addf %86, %87 : vector<4x8x32xf32>
    %89 = vector.extract_strided_slice %29 {offsets = [2, 1, 64], sizes = [4, 8, 32], strides = [1, 1, 1]} : vector<6x10x512xf32> to vector<4x8x32xf32>
    %90 = arith.addf %88, %89 : vector<4x8x32xf32>
    %91 = vector.extract_strided_slice %29 {offsets = [2, 2, 0], sizes = [4, 8, 32], strides = [1, 1, 1]} : vector<6x10x512xf32> to vector<4x8x32xf32>
    %92 = arith.addf %90, %91 : vector<4x8x32xf32>
    %93 = vector.shape_cast %92 : vector<4x8x32xf32> to vector<32x32xf32>
    %94 = arith.truncf %93 : vector<32x32xf32> to vector<32x32xbf16>
    %cst_39 = arith.constant dense<0.000000e+00> : vector<32x32xf32>
    %95 = tpu.matmul %94, %30, %cst_39 {dimension_numbers = #tpu.dot_dimension_numbers<[1], [0], [0], [1], [0, 0, 1, 1], [], []>} : vector<32x32xbf16>, vector<32x32xbf16>, vector<32x32xf32> -> vector<32x32xf32>
    %96 = vector.broadcast %31 : vector<1x32xf32> to vector<32x32xf32>
    %97 = arith.addf %95, %96 : vector<32x32xf32>
    %c0_40 = arith.constant 0 : index
    %c3 = arith.constant 3 : index
    %c0_41 = arith.constant 0 : index
    %c0_42 = arith.constant 0 : index
    %98 = vector.load %arg8[%c0_40, %c3, %c0_41, %c0_42] : memref<1x4x32x32xf32, #tpu.memory_space<vmem>>, vector<1x1x32x32xf32>
    %99 = vector.shape_cast %98 : vector<1x1x32x32xf32> to vector<32x32xf32>
    %100 = arith.addf %97, %99 : vector<32x32xf32>
    %c0_43 = arith.constant 0 : index
    %c3_44 = arith.constant 3 : index
    %c0_45 = arith.constant 0 : index
    %c0_46 = arith.constant 0 : index
    %101 = vector.load %arg9[%c0_43, %c3_44, %c0_45, %c0_46] : memref<1x4x32x32xf32, #tpu.memory_space<vmem>>, vector<1x1x32x32xf32>
    %102 = vector.shape_cast %101 : vector<1x1x32x32xf32> to vector<32x32xf32>
    %103 = vector.shape_cast %100 : vector<32x32xf32> to vector<1x1x32x32xf32>
    tpu.vector_store %arg9[%c0_43, %c3_44, %c0_45, %c0_46], %103 {strides = array<i32>} : memref<1x4x32x32xf32, #tpu.memory_space<vmem>>, vector<1x1x32x32xf32>,
    return
  }
  func.func @transform_0(%arg0: i32, %arg1: i32) -> (i32, i32, i32, i32) {
    %c0_i32 = arith.constant 0 : i32
    %c0_i32_0 = arith.constant 0 : i32
    %c0_i32_1 = arith.constant 0 : i32
    %c0_i32_2 = arith.constant 0 : i32
    return %arg0, %c0_i32, %c0_i32_0, %c0_i32_1 : i32, i32, i32, i32
  }
  func.func @transform_1(%arg0: i32, %arg1: i32) -> (i32, i32) {
    %c0_i32 = arith.constant 0 : i32
    %c0_i32_0 = arith.constant 0 : i32
    %c0_i32_1 = arith.constant 0 : i32
    return %c0_i32, %c0_i32_0 : i32, i32
  }
  func.func @transform_2(%arg0: i32, %arg1: i32) -> (i32, i32) {
    %c0_i32 = arith.constant 0 : i32
    %c0_i32_0 = arith.constant 0 : i32
    %c0_i32_1 = arith.constant 0 : i32
    return %c0_i32, %c0_i32_0 : i32, i32
  }
  func.func @transform_3(%arg0: i32, %arg1: i32) -> (i32, i32) {
    %c0_i32 = arith.constant 0 : i32
    %c0_i32_0 = arith.constant 0 : i32
    %c0_i32_1 = arith.constant 0 : i32
    return %c0_i32, %c0_i32_0 : i32, i32
  }
  func.func @transform_4(%arg0: i32, %arg1: i32) -> (i32, i32) {
    %c0_i32 = arith.constant 0 : i32
    %c0_i32_0 = arith.constant 0 : i32
    %c0_i32_1 = arith.constant 0 : i32
    return %c0_i32, %c0_i32_0 : i32, i32
  }
  func.func @transform_5(%arg0: i32, %arg1: i32) -> (i32, i32) {
    %c0_i32 = arith.constant 0 : i32
    %c0_i32_0 = arith.constant 0 : i32
    %c0_i32_1 = arith.constant 0 : i32
    return %c0_i32, %c0_i32_0 : i32, i32
  }
  func.func @transform_6(%arg0: i32, %arg1: i32) -> (i32, i32, i32, i32) {
    %c0_i32 = arith.constant 0 : i32
    %c0_i32_0 = arith.constant 0 : i32
    %c0_i32_1 = arith.constant 0 : i32
    return %arg0, %c0_i32, %arg1, %c0_i32_0 : i32, i32, i32, i32
  }
  func.func @transform_7(%arg0: i32, %arg1: i32) -> (i32, i32, i32, i32) {
    %c0_i32 = arith.constant 0 : i32
    %c0_i32_0 = arith.constant 0 : i32
    %c0_i32_1 = arith.constant 0 : i32
    return %arg0, %c0_i32, %arg1, %c0_i32_0 : i32, i32, i32, i32
  }
}

</mosaic_0001>

<llo_original>
// kernel: decoder_block_forward.1
$region0: #{decoder_block_forward.1}
  #allocation0 [shape = 'u32[]', space=smem, size = 0x4, offset = 0x4, fixed_abs, tag = 'smem constant byte address 0x4 - core index']
  #allocation1 [shape = 'u32[72,128]{1,0:T(1,128)}', space=vmem, size = 0x9000, scoped, tag = 'internal scratch']
  %s0 = inlined_call_operand.vmem [shape: bf16[2,10,8,64], index: 0, kind: input, shape index: {}]
  %s1 = inlined_call_operand.vmem [shape: bf16[64,16], index: 1, kind: input, shape index: {}]
  %s2 = inlined_call_operand.vmem [shape: bf16[16,512], index: 2, kind: input, shape index: {}]
  %s3 = inlined_call_operand.vmem [shape: bf16[32,32], index: 3, kind: input, shape index: {}]
  %s4 = inlined_call_operand.vmem [shape: f32[1,16], index: 4, kind: input, shape index: {}]
  %s5 = inlined_call_operand.vmem [shape: f32[1,32], index: 5, kind: input, shape index: {}]
  %s6 = inlined_call_operand.vmem [shape: f32[2,4,64,32], index: 6, kind: input, shape index: {}]
  %s7 = inlined_call_operand.vmem [shape: f32[2,4,64,32], index: 7, kind: output, shape index: {}]
  %s8 = sld [smem:[#allocation0]]
  $region133: #{decoder_block_forward.1} parent=0
    _
  %s10 = ssub.s32 1, %s8
  %s11 = scalar_select 0, %s10, %s8
  $region1: #{decoder_block_forward.1} parent=0
    #allocation2 [shape = 'u8[131072]{0}', space=vmem, size = 0x20000, scoped, tag = 'input window, operand 6']
    #allocation3 [shape = 'u8[131072]{0}', space=vmem, size = 0x20000, scoped, tag = 'output window, operand 0']
    loop: start=0, step=1, limit=6
    $region2: #{decoder_block_forward.1} parent=1 // loop_pre_header
      _
    $region3: #{decoder_block_forward.1} parent=1 // loop_header
      %s13 = sphi 0, %s17
      %p14 = scmp.ge.s32.totalorder %s13, 6
      %s20 = sphi 0, %s32
      %s21 = sphi 0, %s28
      %s22 = sphi 0, %s20
      %s23 = sphi 0, %s21
      %s24 = sphi 0, %s22
      %s25 = sphi 0, %s23
      %s35 = sphi 0, %s37
      %s38 = sphi 0, %s35
      %s39 = sphi 0, %s38
      %s55 = sphi 0, %s39
      %s59 = sphi 0, %s59
      %s61 = sphi 0, %s59
      %s62 = sphi 0, %s61
      %s76 = sphi 0, %s62
      %s80 = sphi 0, %s80
      %s82 = sphi 0, %s80
      %s83 = sphi 0, %s82
      %s97 = sphi 0, %s83
      %s101 = sphi 0, %s101
      %s103 = sphi 0, %s101
      %s104 = sphi 0, %s103
      %s118 = sphi 0, %s104
      %s122 = sphi 0, %s122
      %s124 = sphi 0, %s122
      %s125 = sphi 0, %s124
      %s139 = sphi 0, %s125
      %s143 = sphi 0, %s143
      %s145 = sphi 0, %s143
      %s146 = sphi 0, %s145
      %s160 = sphi 0, %s146
      %s168 = sphi 0, %s170
      %s171 = sphi 0, %s168
      %s172 = sphi 0, %s171
      %s188 = sphi 0, %s172
      %s196 = sphi 0, %s198
      %s199 = sphi 0, %s196
      %s200 = sphi 0, %s199
      %s216 = sphi 0, %s200
    $region4: #{decoder_block_forward.1} parent=1 // loop_header_branch
      %16 = sbr.rel (%p14) target = $region8
    $region5: #{decoder_block_forward.1} parent=1 // loop_body
      %s18 = ssub.s32 %s13, 1
      %s19 = ssub.s32 %s13, 2
      %s26 = sadd.s32 1, %s21
      %p27 = scmp.ge.s32.totalorder %s26, 2
      %s28 = scalar_select %p27, 0, %s26
      %s29 = sadd.s32 1, %s20
      %s30 = scalar_select %p27, %s29, %s20
      %p31 = scmp.ge.s32.totalorder %s30, 2
      %s32 = scalar_select %p31, 0, %s30
      %s33 = ssub.s32 %s20, %s32
      %p34 = scmp.eq.s32.totalorder %s33, 0
      %s36 = sadd.s32 %s35, 1
      %s37 = scalar_select %p34, %s35, %s36
      %p40 = pneg %p34
      %p41 = scmp.eq.s32.totalorder %s13, 3
      %p42 = por %p40, %p41
      %p43 = scmp.ne.s32.totalorder %s35, %s38
      %p44 = scmp.eq.s32.totalorder %s13, 0
      %p45 = por %p43, %p44
      %p46 = scmp.ne.s32.totalorder %s35, %s38
      %p47 = scmp.eq.s32.totalorder %s18, 3
      %p48 = por %p46, %p47
      %p49 = scmp.ne.s32.totalorder %s38, %s39
      %p50 = scmp.eq.s32.totalorder %s18, 0
      %p51 = por %p49, %p50
      %p52 = scmp.ne.s32.totalorder %s38, %s39
      %p53 = scmp.eq.s32.totalorder %s19, 3
      %p54 = por %p52, %p53
      %p56 = scmp.ne.s32.totalorder %s39, %s55
      %p57 = scmp.eq.s32.totalorder %s19, 0
      %p58 = por %p56, %p57
      %s60 = sadd.s32 %s59, 1
      %p63 = scmp.eq.s32.totalorder %s13, 3
      %p64 = scmp.ne.s32.totalorder %s59, %s61
      %p65 = scmp.eq.s32.totalorder %s13, 0
      %p66 = por %p64, %p65
      %p67 = scmp.ne.s32.totalorder %s59, %s61
      %p68 = scmp.eq.s32.totalorder %s18, 3
      %p69 = por %p67, %p68
      %p70 = scmp.ne.s32.totalorder %s61, %s62
      %p71 = scmp.eq.s32.totalorder %s18, 0
      %p72 = por %p70, %p71
      %p73 = scmp.ne.s32.totalorder %s61, %s62
      %p74 = scmp.eq.s32.totalorder %s19, 3
      %p75 = por %p73, %p74
      %p77 = scmp.ne.s32.totalorder %s62, %s76
      %p78 = scmp.eq.s32.totalorder %s19, 0
      %p79 = por %p77, %p78
      %s81 = sadd.s32 %s80, 1
      %p84 = scmp.eq.s32.totalorder %s13, 3
      %p85 = scmp.ne.s32.totalorder %s80, %s82
      %p86 = scmp.eq.s32.totalorder %s13, 0
      %p87 = por %p85, %p86
      %p88 = scmp.ne.s32.totalorder %s80, %s82
      %p89 = scmp.eq.s32.totalorder %s18, 3
      %p90 = por %p88, %p89
      %p91 = scmp.ne.s32.totalorder %s82, %s83
      %p92 = scmp.eq.s32.totalorder %s18, 0
      %p93 = por %p91, %p92
      %p94 = scmp.ne.s32.totalorder %s82, %s83
      %p95 = scmp.eq.s32.totalorder %s19, 3
      %p96 = por %p94, %p95
      %p98 = scmp.ne.s32.totalorder %s83, %s97
      %p99 = scmp.eq.s32.totalorder %s19, 0
      %p100 = por %p98, %p99
      %s102 = sadd.s32 %s101, 1
      %p105 = scmp.eq.s32.totalorder %s13, 3
      %p106 = scmp.ne.s32.totalorder %s101, %s103
      %p107 = scmp.eq.s32.totalorder %s13, 0
      %p108 = por %p106, %p107
      %p109 = scmp.ne.s32.totalorder %s101, %s103
      %p110 = scmp.eq.s32.totalorder %s18, 3
      %p111 = por %p109, %p110
      %p112 = scmp.ne.s32.totalorder %s103, %s104
      %p113 = scmp.eq.s32.totalorder %s18, 0
      %p114 = por %p112, %p113
      %p115 = scmp.ne.s32.totalorder %s103, %s104
      %p116 = scmp.eq.s32.totalorder %s19, 3
      %p117 = por %p115, %p116
      %p119 = scmp.ne.s32.totalorder %s104, %s118
      %p120 = scmp.eq.s32.totalorder %s19, 0
      %p121 = por %p119, %p120
      %s123 = sadd.s32 %s122, 1
      %p126 = scmp.eq.s32.totalorder %s13, 3
      %p127 = scmp.ne.s32.totalorder %s122, %s124
      %p128 = scmp.eq.s32.totalorder %s13, 0
      %p129 = por %p127, %p128
      %p130 = scmp.ne.s32.totalorder %s122, %s124
      %p131 = scmp.eq.s32.totalorder %s18, 3
      %p132 = por %p130, %p131
      %p133 = scmp.ne.s32.totalorder %s124, %s125
      %p134 = scmp.eq.s32.totalorder %s18, 0
      %p135 = por %p133, %p134
      %p136 = scmp.ne.s32.totalorder %s124, %s125
      %p137 = scmp.eq.s32.totalorder %s19, 3
      %p138 = por %p136, %p137
      %p140 = scmp.ne.s32.totalorder %s125, %s139
      %p141 = scmp.eq.s32.totalorder %s19, 0
      %p142 = por %p140, %p141
      %s144 = sadd.s32 %s143, 1
      %p147 = scmp.eq.s32.totalorder %s13, 3
      %p148 = scmp.ne.s32.totalorder %s143, %s145
      %p149 = scmp.eq.s32.totalorder %s13, 0
      %p150 = por %p148, %p149
      %p151 = scmp.ne.s32.totalorder %s143, %s145
      %p152 = scmp.eq.s32.totalorder %s18, 3
      %p153 = por %p151, %p152
      %p154 = scmp.ne.s32.totalorder %s145, %s146
      %p155 = scmp.eq.s32.totalorder %s18, 0
      %p156 = por %p154, %p155
      %p157 = scmp.ne.s32.totalorder %s145, %s146
      %p158 = scmp.eq.s32.totalorder %s19, 3
      %p159 = por %p157, %p158
      %p161 = scmp.ne.s32.totalorder %s146, %s160
      %p162 = scmp.eq.s32.totalorder %s19, 0
      %p163 = por %p161, %p162
      %s164 = ssub.s32 %s20, %s32
      %s165 = ssub.s32 %s21, %s28
      %s166 = sor.u32 %s164, %s165
      %p167 = scmp.eq.s32.totalorder %s166, 0
      %s169 = sadd.s32 %s168, 1
      %s170 = scalar_select %p167, %s168, %s169
      %p173 = pneg %p167
      %p174 = scmp.eq.s32.totalorder %s13, 3
      %p175 = por %p173, %p174
      %p176 = scmp.ne.s32.totalorder %s168, %s171
      %p177 = scmp.eq.s32.totalorder %s13, 0
      %p178 = por %p176, %p177
      %p179 = scmp.ne.s32.totalorder %s168, %s171
      %p180 = scmp.eq.s32.totalorder %s18, 3
      %p181 = por %p179, %p180
      %p182 = scmp.ne.s32.totalorder %s171, %s172
      %p183 = scmp.eq.s32.totalorder %s18, 0
      %p184 = por %p182, %p183
      %p185 = scmp.ne.s32.totalorder %s171, %s172
      %p186 = scmp.eq.s32.totalorder %s19, 3
      %p187 = por %p185, %p186
      %p189 = scmp.ne.s32.totalorder %s172, %s188
      %p190 = scmp.eq.s32.totalorder %s19, 0
      %p191 = por %p189, %p190
      %s192 = ssub.s32 %s20, %s32
      %s193 = ssub.s32 %s21, %s28
      %s194 = sor.u32 %s192, %s193
      %p195 = scmp.eq.s32.totalorder %s194, 0
      %s197 = sadd.s32 %s196, 1
      %s198 = scalar_select %p195, %s196, %s197
      %p201 = pneg %p195
      %p202 = scmp.eq.s32.totalorder %s13, 3
      %p203 = por %p201, %p202
      %p204 = scmp.ne.s32.totalorder %s196, %s199
      %p205 = scmp.eq.s32.totalorder %s13, 0
      %p206 = por %p204, %p205
      %p207 = scmp.ne.s32.totalorder %s196, %s199
      %p208 = scmp.eq.s32.totalorder %s18, 3
      %p209 = por %p207, %p208
      %p210 = scmp.ne.s32.totalorder %s199, %s200
      %p211 = scmp.eq.s32.totalorder %s18, 0
      %p212 = por %p210, %p211
      %p213 = scmp.ne.s32.totalorder %s199, %s200
      %p214 = scmp.eq.s32.totalorder %s19, 3
      %p215 = por %p213, %p214
      %p217 = scmp.ne.s32.totalorder %s200, %s216
      %p218 = scmp.eq.s32.totalorder %s19, 0
      %p219 = por %p217, %p218
      %p220 = scmp.le.s32.totalorder 1, %s13
      %p221 = scmp.lt.s32.totalorder %s13, 5
      %p222 = pnand %p220, %p221
      %p223 = pneg %p222
      // Predicated region
      $region9: #{decoder_block_forward.1} parent=5 // pred_check
        _
      $region10: #{decoder_block_forward.1} parent=5 // pred_check_branch
        %225 = sbr.rel (%p222) target = $region12
      $region11: #{decoder_block_forward.1} parent=5 // pred_region
        %s226 = ssub.s32 %s13, 1
        // Predicated region
        $region13: #{decoder_block_forward.1} parent=11 // pred_check
          %p227 = pneg %p72
        $region14: #{decoder_block_forward.1} parent=11 // pred_check_branch
          %229 = sbr.rel (%p227) target = $region16
        $region15: #{decoder_block_forward.1} parent=11 // pred_region
          _
        $region16: #{decoder_block_forward.1} parent=11 // pred_fallthru
          _
        // Predicated region
        $region17: #{decoder_block_forward.1} parent=11 // pred_check
          %p230 = pneg %p93
        $region18: #{decoder_block_forward.1} parent=11 // pred_check_branch
          %232 = sbr.rel (%p230) target = $region20
        $region19: #{decoder_block_forward.1} parent=11 // pred_region
          _
        $region20: #{decoder_block_forward.1} parent=11 // pred_fallthru
          _
        // Predicated region
        $region21: #{decoder_block_forward.1} parent=11 // pred_check
          %p233 = pneg %p114
        $region22: #{decoder_block_forward.1} parent=11 // pred_check_branch
          %235 = sbr.rel (%p233) target = $region24
        $region23: #{decoder_block_forward.1} parent=11 // pred_region
          _
        $region24: #{decoder_block_forward.1} parent=11 // pred_fallthru
          _
        // Predicated region
        $region25: #{decoder_block_forward.1} parent=11 // pred_check
          %p236 = pneg %p135
        $region26: #{decoder_block_forward.1} parent=11 // pred_check_branch
          %238 = sbr.rel (%p236) target = $region28
        $region27: #{decoder_block_forward.1} parent=11 // pred_region
          _
        $region28: #{decoder_block_forward.1} parent=11 // pred_fallthru
          _
        // Predicated region
        $region29: #{decoder_block_forward.1} parent=11 // pred_check
          %p239 = pneg %p156
        $region30: #{decoder_block_forward.1} parent=11 // pred_check_branch
          %241 = sbr.rel (%p239) target = $region32
        $region31: #{decoder_block_forward.1} parent=11 // pred_region
          _
        $region32: #{decoder_block_forward.1} parent=11 // pred_fallthru
          _
      $region12: #{decoder_block_forward.1} parent=5 // pred_fallthru
        _
      %p242 = scmp.lt.s32.totalorder %s13, 4
      // Predicated region
      $region33: #{decoder_block_forward.1} parent=5 // pred_check
        %p243 = pneg %p242
      $region34: #{decoder_block_forward.1} parent=5 // pred_check_branch
        %245 = sbr.rel (%p243) target = $region36
      $region35: #{decoder_block_forward.1} parent=5 // pred_region
        // Predicated region
        $region37: #{decoder_block_forward.1} parent=35 // pred_check
          %p246 = pneg %p45
        $region38: #{decoder_block_forward.1} parent=35 // pred_check_branch
          %248 = sbr.rel (%p246) target = $region40
        $region39: #{decoder_block_forward.1} parent=35 // pred_region
          %p249 = scmp.lt.s32.totalorder %s20, 1
          %s250 = scalar_select %p249, %s20, 1
          %s251 = smul.addr %s250, 10
          %s252 = smul.addr %s251, 4
          %s253 = scalar_lea.vmem %s0, %s252
        $region40: #{decoder_block_forward.1} parent=35 // pred_fallthru
          _
        // Predicated region
        $region41: #{decoder_block_forward.1} parent=35 // pred_check
          %p254 = pneg %p178
        $region42: #{decoder_block_forward.1} parent=35 // pred_check_branch
          %256 = sbr.rel (%p254) target = $region44
        $region43: #{decoder_block_forward.1} parent=35 // pred_region
          %s257 = sand.u32 %s168, 1
          %s258 = sand.u32 %s168, 1
          %s259 = smul.addr %s258, 128
          %s260 = scalar_lea.vmem [#allocation2], %s259
          %s261 = smul.u32 4, %s21
          %s262 = smul.addr %s20, 32
          %s263 = sadd.s32 %s261, %s262
          %s264 = smul.addr %s263, 8
          %s265 = scalar_lea.vmem %s6, %s264
          // Predicated region
          $region45: #{decoder_block_forward.1} parent=43 // pred_check
            _
          $region46: #{decoder_block_forward.1} parent=43 // pred_check_branch
            %267 = sbr.rel (0) target = $region48
          $region47: #{decoder_block_forward.1} parent=43 // pred_region
            // Predicated region
            $region49: #{decoder_block_forward.1} parent=47 // pred_check
              _
            $region50: #{decoder_block_forward.1} parent=47 // pred_check_branch
              %269 = sbr.rel (0) target = $region52
            $region51: #{decoder_block_forward.1} parent=47 // pred_region
              // Predicated region
              $region64: #{decoder_block_forward.1} parent=51 // pred_check
                _
              $region65: #{decoder_block_forward.1} parent=51 // pred_check_branch
                %315 = sbr.rel (0) target = $region67
              $region66: #{decoder_block_forward.1} parent=51 // pred_region
                loop: start=0, step=1, limit=1
                $region68: #{decoder_block_forward.1} parent=66 // loop_pre_header
                  _
                $region69: #{decoder_block_forward.1} parent=66 // loop_header
                  %s317 = sphi 0, %s321
                  %p318 = scmp.ge.s32.totalorder %s317, 1
                  %s322 = sphi %s265, %s265
                  %s323 = sphi %s260, %s260
                $region70: #{decoder_block_forward.1} parent=66 // loop_header_branch
                  %320 = sbr.rel (%p318) target = $region74
                $region71: #{decoder_block_forward.1} parent=66 // loop_body
                  %v324 = vld [vmem:[%s322] sm:$0xff]
                  %325 = vst [vmem:[%s323] sm:$0xff] %v324
                  %v326 = vld [vmem:[%s322 + $0x8] sm:$0xff]
                  %327 = vst [vmem:[%s323 + $0x8] sm:$0xff] %v326
                  %v328 = vld [vmem:[%s322 + $0x10] sm:$0xff]
                  %329 = vst [vmem:[%s323 + $0x10] sm:$0xff] %v328
                  %v330 = vld [vmem:[%s322 + $0x18] sm:$0xff]
                  %331 = vst [vmem:[%s323 + $0x18] sm:$0xff] %v330
                  %v332 = vld [vmem:[%s322 + $0x40] sm:$0xff]
                  %333 = vst [vmem:[%s323 + $0x20] sm:$0xff] %v332
                  %v334 = vld [vmem:[%s322 + $0x48] sm:$0xff]
                  %335 = vst [vmem:[%s323 + $0x28] sm:$0xff] %v334
                  %v336 = vld [vmem:[%s322 + $0x50] sm:$0xff]
                  %337 = vst [vmem:[%s323 + $0x30] sm:$0xff] %v336
                  %v338 = vld [vmem:[%s322 + $0x58] sm:$0xff]
                  %339 = vst [vmem:[%s323 + $0x38] sm:$0xff] %v338
                  %v340 = vld [vmem:[%s322 + $0x80] sm:$0xff]
                  %341 = vst [vmem:[%s323 + $0x40] sm:$0xff] %v340
                  %v342 = vld [vmem:[%s322 + $0x88] sm:$0xff]
                  %343 = vst [vmem:[%s323 + $0x48] sm:$0xff] %v342
                  %v344 = vld [vmem:[%s322 + $0x90] sm:$0xff]
                  %345 = vst [vmem:[%s323 + $0x50] sm:$0xff] %v344
                  %v346 = vld [vmem:[%s322 + $0x98] sm:$0xff]
                  %347 = vst [vmem:[%s323 + $0x58] sm:$0xff] %v346
                  %v348 = vld [vmem:[%s322 + $0xc0] sm:$0xff]
                  %349 = vst [vmem:[%s323 + $0x60] sm:$0xff] %v348
                  %v350 = vld [vmem:[%s322 + $0xc8] sm:$0xff]
                  %351 = vst [vmem:[%s323 + $0x68] sm:$0xff] %v350
                  %v352 = vld [vmem:[%s322 + $0xd0] sm:$0xff]
                  %353 = vst [vmem:[%s323 + $0x70] sm:$0xff] %v352
                  %v354 = vld [vmem:[%s322 + $0xd8] sm:$0xff]
                  %355 = vst [vmem:[%s323 + $0x78] sm:$0xff] %v354
                $region72: #{decoder_block_forward.1} parent=66 // loop_footer
                  %s321 = sadd.s32 1, %s317
                $region73: #{decoder_block_forward.1} parent=66 // loop_footer_branch
                  %316 = sbr.rel target = $region69
                $region74: #{decoder_block_forward.1} parent=66 // loop_exit
                  _
              $region67: #{decoder_block_forward.1} parent=51 // pred_fallthru
                _
              // Predicated region
              $region75: #{decoder_block_forward.1} parent=51 // pred_check
                _
              $region76: #{decoder_block_forward.1} parent=51 // pred_check_branch
                %357 = sbr.rel target = $region78
              $region77: #{decoder_block_forward.1} parent=51 // pred_region
                _
              $region78: #{decoder_block_forward.1} parent=51 // pred_fallthru
                _
            $region52: #{decoder_block_forward.1} parent=47 // pred_fallthru
              _
            // Predicated region
            $region53: #{decoder_block_forward.1} parent=47 // pred_check
              _
            $region54: #{decoder_block_forward.1} parent=47 // pred_check_branch
              %271 = sbr.rel target = $region56
            $region55: #{decoder_block_forward.1} parent=47 // pred_region
              %s273 = ssub.s32 256, 1
              loop: start=0, step=1, limit=1
              $region57: #{decoder_block_forward.1} parent=55 // loop_pre_header
                _
              $region58: #{decoder_block_forward.1} parent=55 // loop_header
                %s275 = sphi 0, %s279
                %p276 = scmp.ge.s32.totalorder %s275, 1
                %s280 = sphi %s265, %s265
                %s281 = sphi %s260, %s260
              $region59: #{decoder_block_forward.1} parent=55 // loop_header_branch
                %278 = sbr.rel (%p276) target = $region63
              $region60: #{decoder_block_forward.1} parent=55 // loop_body
                %v282 = vld [vmem:[%s280] sm:%s273]
                %283 = vst [vmem:[%s281] sm:%s273] %v282
                %v284 = vld [vmem:[%s280 + $0x8] sm:%s273]
                %285 = vst [vmem:[%s281 + $0x8] sm:%s273] %v284
                %v286 = vld [vmem:[%s280 + $0x10] sm:%s273]
                %287 = vst [vmem:[%s281 + $0x10] sm:%s273] %v286
                %v288 = vld [vmem:[%s280 + $0x18] sm:%s273]
                %289 = vst [vmem:[%s281 + $0x18] sm:%s273] %v288
                %v290 = vld [vmem:[%s280 + $0x40] sm:%s273]
                %291 = vst [vmem:[%s281 + $0x20] sm:%s273] %v290
                %v292 = vld [vmem:[%s280 + $0x48] sm:%s273]
                %293 = vst [vmem:[%s281 + $0x28] sm:%s273] %v292
                %v294 = vld [vmem:[%s280 + $0x50] sm:%s273]
                %295 = vst [vmem:[%s281 + $0x30] sm:%s273] %v294
                %v296 = vld [vmem:[%s280 + $0x58] sm:%s273]
                %297 = vst [vmem:[%s281 + $0x38] sm:%s273] %v296
                %v298 = vld [vmem:[%s280 + $0x80] sm:%s273]
                %299 = vst [vmem:[%s281 + $0x40] sm:%s273] %v298
                %v300 = vld [vmem:[%s280 + $0x88] sm:%s273]
                %301 = vst [vmem:[%s281 + $0x48] sm:%s273] %v300
                %v302 = vld [vmem:[%s280 + $0x90] sm:%s273]
                %303 = vst [vmem:[%s281 + $0x50] sm:%s273] %v302
                %v304 = vld [vmem:[%s280 + $0x98] sm:%s273]
                %305 = vst [vmem:[%s281 + $0x58] sm:%s273] %v304
                %v306 = vld [vmem:[%s280 + $0xc0] sm:%s273]
                %307 = vst [vmem:[%s281 + $0x60] sm:%s273] %v306
                %v308 = vld [vmem:[%s280 + $0xc8] sm:%s273]
                %309 = vst [vmem:[%s281 + $0x68] sm:%s273] %v308
                %v310 = vld [vmem:[%s280 + $0xd0] sm:%s273]
                %311 = vst [vmem:[%s281 + $0x70] sm:%s273] %v310
                %v312 = vld [vmem:[%s280 + $0xd8] sm:%s273]
                %313 = vst [vmem:[%s281 + $0x78] sm:%s273] %v312
              $region61: #{decoder_block_forward.1} parent=55 // loop_footer
                %s279 = sadd.s32 1, %s275
              $region62: #{decoder_block_forward.1} parent=55 // loop_footer_branch
                %274 = sbr.rel target = $region58
              $region63: #{decoder_block_forward.1} parent=55 // loop_exit
                _
            $region56: #{decoder_block_forward.1} parent=47 // pred_fallthru
              _
          $region48: #{decoder_block_forward.1} parent=43 // pred_fallthru
            _
          %358 = vnop
        $region44: #{decoder_block_forward.1} parent=35 // pred_fallthru
          _
      $region36: #{decoder_block_forward.1} parent=5 // pred_fallthru
        _
      %p359 = scmp.le.s32.totalorder 1, %s13
      %p360 = scmp.lt.s32.totalorder %s13, 5
      %p361 = pnand %p359, %p360
      %p362 = pneg %p361
      // Predicated region
      $region79: #{decoder_block_forward.1} parent=5 // pred_check
        _
      $region80: #{decoder_block_forward.1} parent=5 // pred_check_branch
        %364 = sbr.rel (%p361) target = $region82
      $region81: #{decoder_block_forward.1} parent=5 // pred_region
        %s365 = ssub.s32 %s13, 1
        %s366 = sand.u32 %s171, 1
        %s367 = sand.u32 %s171, 1
        %s368 = smul.addr %s367, 128
        %s369 = scalar_lea.vmem [#allocation2], %s368
        // Predicated region
        $region83: #{decoder_block_forward.1} parent=81 // pred_check
          %p370 = pneg %p184
        $region84: #{decoder_block_forward.1} parent=81 // pred_check_branch
          %372 = sbr.rel (%p370) target = $region86
        $region85: #{decoder_block_forward.1} parent=81 // pred_region
          _
        $region86: #{decoder_block_forward.1} parent=81 // pred_fallthru
          _
        %p373 = scmp.lt.s32.totalorder %s22, 1
        %s374 = scalar_select %p373, %s22, 1
        %s375 = smul.addr %s374, 10
        %s376 = smul.addr %s375, 4
        %s377 = scalar_lea.vmem %s0, %s376
        %p378 = pneg %p51
        %p379 = pneg %p48
        %p380 = pneg %p72
        %p381 = pneg %p69
        %p382 = pneg %p93
        %p383 = pneg %p90
        %p384 = pneg %p114
        %p385 = pneg %p111
        %p386 = pneg %p135
        %p387 = pneg %p132
        %p388 = pneg %p156
        %p389 = pneg %p153
        %s390 = sand.u32 %s171, 1
        %s391 = sand.u32 %s171, 1
        %s392 = smul.addr %s391, 128
        %s393 = scalar_lea.vmem [#allocation2], %s392
        %p394 = pneg %p184
        %p395 = pneg %p181
        %p396 = pneg %p212
        %p397 = pneg %p209
        %s398 = sand.u32 %s199, 1
        %s399 = sand.u32 %s199, 1
        %s400 = smul.addr %s399, 128
        %s401 = scalar_lea.vmem [#allocation3], %s400
        %p402 = scmp.lt.s32.totalorder %s22, 1
        %s403 = scalar_select %p402, %s22, 1
        %s404 = smul.addr %s403, 10
        %s405 = smul.addr %s404, 4
        %s406 = scalar_lea.vmem %s0, %s405
        %s407 = smul.u32 4, %s23
        %s408 = smul.u32 4, %s23
        %s410 = smul.u32 %s23, 4
        %s411 = smul.addr %s410, 4
        %s412 = scalar_lea.vmem %s406, %s411
        %v413 = vld [vmem:[%s412] sm:$0xf]
        %v414 = vld [vmem:[%s412 + $0x4] sm:$0xf]
        %v415 = vld [vmem:[%s412 + $0x8] sm:$0xf]
        %v416 = vld [vmem:[%s412 + $0xc] sm:$0xf]
        %v417 = vld [vmem:[%s412 + $0x10] sm:$0xf]
        %v418 = vld [vmem:[%s412 + $0x14] sm:$0xf]
        %v419 = vld [vmem:[%s1] sm:$0xf]
        %v420 = vld [vmem:[%s1 + $0x4] sm:$0xf]
        %v421 = vld [vmem:[%s1 + $0x8] sm:$0xf]
        %v422 = vld [vmem:[%s1 + $0xc] sm:$0xf]
        %v423 = vld [vmem:[%s1 + $0x10] sm:$0xf]
        %v424 = vld [vmem:[%s1 + $0x14] sm:$0xf]
        %v425 = vld [vmem:[%s1 + $0x18] sm:$0xf]
        %v426 = vld [vmem:[%s1 + $0x1c] sm:$0xf]
        %v427 = vstv %s410
        %v428 = vadd.s32 %v427, 1
        %v429 = vadd.s32 %v427, 2
        %v430 = vadd.s32 %v427, 3
        %v431 = vadd.s32 %v427, 4
        %v432 = vadd.s32 %v427, 5
        %vm433 = vcmp.ge.s32.totalorder %v427, 1
        %vm434 = vcmp.ge.s32.totalorder %v428, 1
        %vm435 = vcmp.ge.s32.totalorder %v429, 1
        %vm436 = vcmp.ge.s32.totalorder %v430, 1
        %vm437 = vcmp.ge.s32.totalorder %v431, 1
        %vm438 = vcmp.ge.s32.totalorder %v432, 1
        %vm439 = vcmp.le.s32.totalorder %v427, 8
        %vm440 = vcmp.le.s32.totalorder %v428, 8
        %vm441 = vcmp.le.s32.totalorder %v429, 8
        %vm442 = vcmp.le.s32.totalorder %v430, 8
        %vm443 = vcmp.le.s32.totalorder %v431, 8
        %vm444 = vcmp.le.s32.totalorder %v432, 8
        %vm445 = vmand %vm433, %vm439
        %vm446 = vmand %vm434, %vm440
        %vm447 = vmand %vm435, %vm441
        %vm448 = vmand %vm436, %vm442
        %vm449 = vmand %vm437, %vm443
        %vm450 = vmand %vm438, %vm444
        %v451 = vsel %vm445, 1, 0
        %v452 = vsel %vm446, 1, 0
        %v453 = vsel %vm447, 1, 0
        %v454 = vsel %vm448, 1, 0
        %v455 = vsel %vm449, 1, 0
        %v456 = vsel %vm450, 1, 0
        %v457 = vcvt.s32.f32 %v451
        %v458 = vcvt.s32.f32 %v452
        %v459 = vcvt.s32.f32 %v453
        %v460 = vcvt.s32.f32 %v454
        %v461 = vcvt.s32.f32 %v455
        %v462 = vcvt.s32.f32 %v456
        %v463 = vld [vmem:[%s4] sm:$0x1]
        %v465 = vperm.slane %v463, 0
        %v467 = vmul.f32 %v465, %v457
        %v468 = vmul.f32 %v465, %v458
        %v469 = vmul.f32 %v465, %v459
        %v470 = vmul.f32 %v465, %v460
        %v471 = vmul.f32 %v465, %v461
        %v472 = vmul.f32 %v465, %v462
        %v479 = vunpack.c.l.b16 %v413
        %v480 = vunpack.c.l.b16 %v414
        %v481 = vunpack.c.l.b16 %v415
        %v482 = vunpack.c.l.b16 %v416
        %v483 = vunpack.c.l.b16 %v417
        %v484 = vunpack.c.l.b16 %v418
        %v485 = vpack.c.b16 %v480, %v479
        %v486 = vpack.c.b16 %v482, %v481
        %v487 = vpack.c.b16 %v484, %v483
        %v496 = vunpack.c.l.b16 %v419
        %v497 = vunpack.c.l.b16 %v420
        %v498 = vunpack.c.l.b16 %v421
        %v499 = vunpack.c.l.b16 %v422
        %v500 = vunpack.c.l.b16 %v423
        %v501 = vunpack.c.l.b16 %v424
        %v502 = vunpack.c.l.b16 %v425
        %v503 = vunpack.c.l.b16 %v426
        %v504 = vpack.c.b16 %v497, %v496
        %v505 = vpack.c.b16 %v499, %v498
        %v506 = vpack.c.b16 %v501, %v500
        %v507 = vpack.c.b16 %v503, %v502
        %vm512 = vcmask 523264
        %v514 = vsel %vm512, %v485, 0
        %v517 = vsel %vm512, %v486, 0
        %v520 = vsel %vm512, %v487, 0
        %522 = vmatpush.bf16.msra.mxu0 0
        %523 = vmatpush.bf16.msra.mxu0 0
        %524 = vmatpush.bf16.msra.mxu0 0
        %525 = vmatpush.bf16.msra.mxu0 0
        %526 = vmatpush.bf16.msra.mxu0 %v507
        %527 = vmatpush.bf16.msra.mxu0 %v506
        %528 = vmatpush.bf16.msra.mxu0 %v505
        %529 = vmatpush.bf16.msra.mxu0 %v504
        %530 = vmatmul.bf16.gmra.mxu0 %v514
        %v531 = vpop.f32.mrf.mxu0
        %v532 = vadd.f32 %v467, %v531
        %v533 = vpop.f32.mrf.mxu0
        %v534 = vadd.f32 %v468, %v533
        %535 = vmatmul.bf16.gmra.mxu0 %v517
        %v536 = vpop.f32.mrf.mxu0
        %v537 = vadd.f32 %v469, %v536
        %v538 = vpop.f32.mrf.mxu0
        %v539 = vadd.f32 %v470, %v538
        %540 = vmatmul.bf16.gmra.mxu0 %v520
        %v541 = vpop.f32.mrf.mxu0
        %v542 = vadd.f32 %v471, %v541
        %v543 = vpop.f32.mrf.mxu0
        %v544 = vadd.f32 %v472, %v543
        %545 = vdwg.mxu0
        %v546 = vpack.c.bf16 %v534, %v532
        %v547 = vpack.c.bf16 %v539, %v537
        %v548 = vpack.c.bf16 %v544, %v542
        %v549 = vld [vmem:[%s2] sm:$0xff]
        %v550 = vld [vmem:[%s2 + $0x8] sm:$0xff]
        %v551 = vld [vmem:[%s2 + $0x10] sm:$0xff]
        %v552 = vld [vmem:[%s2 + $0x18] sm:$0xff]
        %v557 = vunpack.c.l.b16 %v549
        %v558 = vunpack.c.h.b16 %v549
        %v559 = vunpack.c.l.b16 %v550
        %v560 = vunpack.c.h.b16 %v550
        %v561 = vunpack.c.l.b16 %v551
        %v562 = vunpack.c.h.b16 %v551
        %v563 = vunpack.c.l.b16 %v552
        %v564 = vunpack.c.h.b16 %v552
        %v565 = vpack.c.b16 %v561, %v557
        %v566 = vpack.c.b16 %v562, %v558
        %v567 = vpack.c.b16 %v563, %v559
        %v568 = vpack.c.b16 %v564, %v560
        %vm573 = vcmask 130048
        %v575 = vsel %vm573, %v546, 0
        %v578 = vsel %vm573, %v547, 0
        %v581 = vsel %vm573, %v548, 0
        %583 = vmatpush.bf16.msra.mxu0 0
        %584 = vmatpush.bf16.msra.mxu0 0
        %585 = vmatpush.bf16.msra.mxu0 0
        %586 = vmatpush.bf16.msra.mxu0 0
        %587 = vmatpush.bf16.msra.mxu0 0
        %588 = vmatpush.bf16.msra.mxu0 0
        %589 = vmatpush.bf16.msra.mxu0 0
        %590 = vmatpush.bf16.msra.mxu0 %v565
        %591 = vmatmul.bf16.gmra.mxu0 %v575
        %v592 = vpop.f32.mrf.mxu0
        %v593 = vpop.f32.mrf.mxu0
        %594 = vmatmul.bf16.gmra.mxu0 %v578
        %v595 = vpop.f32.mrf.mxu0
        %v596 = vadd.f32 0.0, %v595
        %v597 = vpop.f32.mrf.mxu0
        %v598 = vadd.f32 0.0, %v597
        %599 = vmatmul.bf16.gmra.mxu0 %v581
        %v600 = vpop.f32.mrf.mxu0
        %v601 = vadd.f32 0.0, %v600
        %v602 = vpop.f32.mrf.mxu0
        %v603 = vadd.f32 0.0, %v602
        %604 = vdwg.mxu0
        %605 = vmatpush.bf16.msra.mxu0 0
        %606 = vmatpush.bf16.msra.mxu0 0
        %607 = vmatpush.bf16.msra.mxu0 0
        %608 = vmatpush.bf16.msra.mxu0 0
        %609 = vmatpush.bf16.msra.mxu0 0
        %610 = vmatpush.bf16.msra.mxu0 0
        %611 = vmatpush.bf16.msra.mxu0 0
        %612 = vmatpush.bf16.msra.mxu0 %v566
        %613 = vmatmul.bf16.gmra.mxu0 %v575
        %v614 = vpop.f32.mrf.mxu0
        %v615 = vpop.f32.mrf.mxu0
        %v616 = vadd.f32 0.0, %v615
        %617 = vmatmul.bf16.gmra.mxu0 %v578
        %v618 = vpop.f32.mrf.mxu0
        %v619 = vadd.f32 0.0, %v618
        %v620 = vpop.f32.mrf.mxu0
        %v621 = vadd.f32 0.0, %v620
        %622 = vmatmul.bf16.gmra.mxu0 %v581
        %v623 = vpop.f32.mrf.mxu0
        %v624 = vadd.f32 0.0, %v623
        %v625 = vpop.f32.mrf.mxu0
        %626 = vdwg.mxu0
        %627 = vmatpush.bf16.msra.mxu0 0
        %628 = vmatpush.bf16.msra.mxu0 0
        %629 = vmatpush.bf16.msra.mxu0 0
        %630 = vmatpush.bf16.msra.mxu0 0
        %631 = vmatpush.bf16.msra.mxu0 0
        %632 = vmatpush.bf16.msra.mxu0 0
        %633 = vmatpush.bf16.msra.mxu0 0
        %634 = vmatpush.bf16.msra.mxu0 %v567
        %635 = vmatmul.bf16.gmra.mxu0 %v575
        %v636 = vpop.f32.mrf.mxu0
        %v637 = vpop.f32.mrf.mxu0
        %v638 = vadd.f32 0.0, %v637
        %639 = vmatmul.bf16.gmra.mxu0 %v578
        %v640 = vpop.f32.mrf.mxu0
        %v641 = vadd.f32 0.0, %v640
        %v642 = vpop.f32.mrf.mxu0
        %v643 = vadd.f32 0.0, %v642
        %644 = vmatmul.bf16.gmra.mxu0 %v581
        %v645 = vpop.f32.mrf.mxu0
        %v646 = vadd.f32 0.0, %v645
        %v647 = vpop.f32.mrf.mxu0
        %648 = vdwg.mxu0
        %649 = vmatpush.bf16.msra.mxu0 0
        %650 = vmatpush.bf16.msra.mxu0 0
        %651 = vmatpush.bf16.msra.mxu0 0
        %652 = vmatpush.bf16.msra.mxu0 0
        %653 = vmatpush.bf16.msra.mxu0 0
        %654 = vmatpush.bf16.msra.mxu0 0
        %655 = vmatpush.bf16.msra.mxu0 0
        %656 = vmatpush.bf16.msra.mxu0 %v568
        %657 = vmatmul.bf16.gmra.mxu0 %v575
        %v658 = vpop.f32.mrf.mxu0
        %v659 = vadd.f32 0.0, %v658
        %v660 = vpop.f32.mrf.mxu0
        %v661 = vadd.f32 0.0, %v660
        %662 = vmatmul.bf16.gmra.mxu0 %v578
        %v663 = vpop.f32.mrf.mxu0
        %v664 = vadd.f32 0.0, %v663
        %v665 = vpop.f32.mrf.mxu0
        %v666 = vadd.f32 0.0, %v665
        %667 = vmatmul.bf16.gmra.mxu0 %v581
        %v668 = vpop.f32.mrf.mxu0
        %v669 = vpop.f32.mrf.mxu0
        %670 = vdwg.mxu0
        %v687 = vrot.slane %v659, 7
        %v688 = vrot.slane %v616, 7
        %v689 = vrot.slane %v638, 7
        %v690 = vrot.slane %v661, 7
        %v691 = vrot.slane %v596, 7
        %v692 = vrot.slane %v619, 7
        %v693 = vrot.slane %v641, 7
        %v694 = vrot.slane %v664, 7
        %v695 = vrot.slane %v598, 7
        %v696 = vrot.slane %v621, 7
        %v697 = vrot.slane %v643, 7
        %v698 = vrot.slane %v666, 7
        %v699 = vrot.slane %v601, 7
        %v700 = vrot.slane %v624, 7
        %v701 = vrot.slane %v646, 7
        %v702 = vrot.slane %v603, 7
        %vm719 = vcmask 1040384
        %v720 = vsel %vm719, 0.0, %v687
        %v721 = vsel %vm719, 0.0, %v688
        %v722 = vsel %vm719, 0.0, %v689
        %v723 = vsel %vm719, 0.0, %v690
        %v724 = vsel %vm719, 0.0, %v691
        %v725 = vsel %vm719, 0.0, %v692
        %v726 = vsel %vm719, 0.0, %v693
        %v727 = vsel %vm719, 0.0, %v694
        %v728 = vsel %vm719, 0.0, %v695
        %v729 = vsel %vm719, 0.0, %v696
        %v730 = vsel %vm719, 0.0, %v697
        %v731 = vsel %vm719, 0.0, %v698
        %v732 = vsel %vm719, 0.0, %v699
        %v733 = vsel %vm719, 0.0, %v700
        %v734 = vsel %vm719, 0.0, %v701
        %v735 = vsel %vm719, 0.0, %v702
        %v736 = vsel %vm719, %v687, 0.0
        %v737 = vsel %vm719, %v688, 0.0
        %v738 = vsel %vm719, %v689, 0.0
        %v739 = vsel %vm719, %v690, 0.0
        %v740 = vsel %vm719, %v691, 0.0
        %v741 = vsel %vm719, %v692, 0.0
        %v742 = vsel %vm719, %v693, 0.0
        %v743 = vsel %vm719, %v694, 0.0
        %v744 = vsel %vm719, %v695, 0.0
        %v745 = vsel %vm719, %v696, 0.0
        %v746 = vsel %vm719, %v697, 0.0
        %v747 = vsel %vm719, %v698, 0.0
        %v748 = vsel %vm719, %v699, 0.0
        %v749 = vsel %vm719, %v700, 0.0
        %v750 = vsel %vm719, %v701, 0.0
        %v751 = vsel %vm719, %v702, 0.0
        %v752 = vld [vmem:[%s3] sm:$0xf]
        %v753 = vld [vmem:[%s3 + $0x4] sm:$0xf]
        %v754 = vld [vmem:[%s3 + $0x8] sm:$0xf]
        %v755 = vld [vmem:[%s3 + $0xc] sm:$0xf]
        %v756 = vld [vmem:[%s5] sm:$0x1]
        %vm765 = vcmask 1046528
        %v766 = vrot.slane %v720, 1
        %v767 = vrot.slane %v736, 1
        %v768 = vsel %vm765, %v766, %v767
        %v769 = vrot.slane %v723, 1
        %v770 = vrot.slane %v739, 1
        %v771 = vsel %vm765, %v769, %v770
        %v772 = vrot.slane %v727, 1
        %v773 = vrot.slane %v743, 1
        %v774 = vsel %vm765, %v772, %v773
        %v775 = vrot.slane %v731, 1
        %v776 = vrot.slane %v747, 1
        %v777 = vsel %vm765, %v775, %v776
        %778 = vrot.lane.b32.xlu0 %v768, 64
        %v779 = vpop.permute.xlu0 %778
        %780 = vrot.lane.b32.xlu0 %v771, 64
        %v781 = vpop.permute.xlu0 %780
        %782 = vrot.lane.b32.xlu0 %v774, 64
        %v783 = vpop.permute.xlu0 %782
        %784 = vrot.lane.b32.xlu0 %v777, 64
        %v785 = vpop.permute.xlu0 %784
        %v790 = vadd.f32 %v720, %v779
        %v791 = vadd.f32 %v723, %v781
        %v792 = vadd.f32 %v727, %v783
        %v793 = vadd.f32 %v731, %v785
        %v794 = vadd.f32 %v790, %v721
        %v795 = vadd.f32 %v791, %v725
        %v796 = vadd.f32 %v792, %v729
        %v797 = vadd.f32 %v793, %v733
        %v806 = vrot.slane %v721, 1
        %v807 = vrot.slane %v737, 1
        %v808 = vsel %vm765, %v806, %v807
        %v809 = vrot.slane %v725, 1
        %v810 = vrot.slane %v741, 1
        %v811 = vsel %vm765, %v809, %v810
        %v812 = vrot.slane %v729, 1
        %v813 = vrot.slane %v745, 1
        %v814 = vsel %vm765, %v812, %v813
        %v815 = vrot.slane %v733, 1
        %v816 = vrot.slane %v749, 1
        %v817 = vsel %vm765, %v815, %v816
        %818 = vrot.lane.b32.xlu0 %v808, 64
        %v819 = vpop.permute.xlu0 %818
        %820 = vrot.lane.b32.xlu0 %v811, 64
        %v821 = vpop.permute.xlu0 %820
        %822 = vrot.lane.b32.xlu0 %v814, 64
        %v823 = vpop.permute.xlu0 %822
        %824 = vrot.lane.b32.xlu0 %v817, 64
        %v825 = vpop.permute.xlu0 %824
        %v830 = vadd.f32 %v794, %v819
        %v831 = vadd.f32 %v795, %v821
        %v832 = vadd.f32 %v796, %v823
        %v833 = vadd.f32 %v797, %v825
        %v834 = vpack.c.bf16 %v831, %v830
        %v835 = vpack.c.bf16 %v833, %v832
        %v837 = vperm.slane %v756, 0
        %841 = vrot.lane.b32.xlu0 %v834, 32
        %v842 = vpop.permute.xlu0 %841
        %843 = vrot.lane.b32.xlu0 %v835, 32
        %v844 = vpop.permute.xlu0 %843
        %v849 = vunpack.c.l.b16 %v752
        %v850 = vunpack.c.l.b16 %v753
        %v851 = vunpack.c.l.b16 %v754
        %v852 = vunpack.c.l.b16 %v755
        %v853 = vpack.c.b16 %v850, %v849
        %v854 = vpack.c.b16 %v852, %v851
        %vm857 = vcmask 261120
        %v859 = vsel %vm857, %v842, 0
        %v862 = vsel %vm857, %v844, 0
        %864 = vmatpush.bf16.msra.mxu0 0
        %865 = vmatpush.bf16.msra.mxu0 0
        %866 = vmatpush.bf16.msra.mxu0 0
        %867 = vmatpush.bf16.msra.mxu0 0
        %868 = vmatpush.bf16.msra.mxu0 0
        %869 = vmatpush.bf16.msra.mxu0 0
        %870 = vmatpush.bf16.msra.mxu0 %v854
        %871 = vmatpush.bf16.msra.mxu0 %v853
        %872 = vmatmul.bf16.gmra.mxu0 %v859
        %v873 = vpop.f32.mrf.mxu0
        %v874 = vadd.f32 %v837, %v873
        %v875 = vpop.f32.mrf.mxu0
        %v876 = vadd.f32 %v837, %v875
        %877 = vmatmul.bf16.gmra.mxu0 %v862
        %v878 = vpop.f32.mrf.mxu0
        %v879 = vadd.f32 %v837, %v878
        %v880 = vpop.f32.mrf.mxu0
        %v881 = vadd.f32 %v837, %v880
        %882 = vdwg.mxu0
        %v883 = vld [vmem:[%s369] sm:$0xff]
        %v884 = vld [vmem:[%s369 + $0x8] sm:$0xff]
        %v885 = vld [vmem:[%s369 + $0x10] sm:$0xff]
        %v886 = vld [vmem:[%s369 + $0x18] sm:$0xff]
        %v887 = vadd.f32 %v874, %v883
        %v888 = vadd.f32 %v876, %v884
        %v889 = vadd.f32 %v879, %v885
        %v890 = vadd.f32 %v881, %v886
        %891 = vst.msk [vmem:[%s401] sm:$0xff] %vm857, %v887
        %892 = vst.msk [vmem:[%s401 + $0x8] sm:$0xff] %vm857, %v888
        %893 = vst.msk [vmem:[%s401 + $0x10] sm:$0xff] %vm857, %v889
        %894 = vst.msk [vmem:[%s401 + $0x18] sm:$0xff] %vm857, %v890
        %895 = vrot.lane.b32.xlu0 %v767, 64
        %v896 = vpop.permute.xlu0 %895
        %897 = vrot.lane.b32.xlu0 %v770, 64
        %v898 = vpop.permute.xlu0 %897
        %899 = vrot.lane.b32.xlu0 %v773, 64
        %v900 = vpop.permute.xlu0 %899
        %901 = vrot.lane.b32.xlu0 %v776, 64
        %v902 = vpop.permute.xlu0 %901
        %v907 = vadd.f32 %v736, %v896
        %v908 = vadd.f32 %v739, %v898
        %v909 = vadd.f32 %v743, %v900
        %v910 = vadd.f32 %v747, %v902
        %v911 = vadd.f32 %v907, %v737
        %v912 = vadd.f32 %v908, %v741
        %v913 = vadd.f32 %v909, %v745
        %v914 = vadd.f32 %v910, %v749
        %915 = vrot.lane.b32.xlu0 %v807, 64
        %v916 = vpop.permute.xlu0 %915
        %917 = vrot.lane.b32.xlu0 %v810, 64
        %v918 = vpop.permute.xlu0 %917
        %919 = vrot.lane.b32.xlu0 %v813, 64
        %v920 = vpop.permute.xlu0 %919
        %921 = vrot.lane.b32.xlu0 %v816, 64
        %v922 = vpop.permute.xlu0 %921
        %v927 = vadd.f32 %v911, %v916
        %v928 = vadd.f32 %v912, %v918
        %v929 = vadd.f32 %v913, %v920
        %v930 = vadd.f32 %v914, %v922
        %v939 = vrot.slane %v830, 1
        %v940 = vrot.slane %v927, 1
        %v941 = vsel %vm765, %v939, %v940
        %v942 = vrot.slane %v831, 1
        %v943 = vrot.slane %v928, 1
        %v944 = vsel %vm765, %v942, %v943
        %v945 = vrot.slane %v832, 1
        %v946 = vrot.slane %v929, 1
        %v947 = vsel %vm765, %v945, %v946
        %v948 = vrot.slane %v833, 1
        %v949 = vrot.slane %v930, 1
        %v950 = vsel %vm765, %v948, %v949
        %v955 = vpack.c.bf16 %v944, %v941
        %v956 = vpack.c.bf16 %v950, %v947
        %959 = vrot.lane.b32.xlu0 %v955, 64
        %v960 = vpop.permute.xlu0 %959
        %961 = vrot.lane.b32.xlu0 %v956, 64
        %v962 = vpop.permute.xlu0 %961
        %v964 = vsel %vm857, %v960, 0
        %v967 = vsel %vm857, %v962, 0
        %969 = vmatpush.bf16.msra.mxu0 0
        %970 = vmatpush.bf16.msra.mxu0 0
        %971 = vmatpush.bf16.msra.mxu0 0
        %972 = vmatpush.bf16.msra.mxu0 0
        %973 = vmatpush.bf16.msra.mxu0 0
        %974 = vmatpush.bf16.msra.mxu0 0
        %975 = vmatpush.bf16.msra.mxu0 %v854
        %976 = vmatpush.bf16.msra.mxu0 %v853
        %977 = vmatmul.bf16.gmra.mxu0 %v964
        %v978 = vpop.f32.mrf.mxu0
        %v979 = vadd.f32 %v837, %v978
        %v980 = vpop.f32.mrf.mxu0
        %v981 = vadd.f32 %v837, %v980
        %982 = vmatmul.bf16.gmra.mxu0 %v967
        %v983 = vpop.f32.mrf.mxu0
        %v984 = vadd.f32 %v837, %v983
        %v985 = vpop.f32.mrf.mxu0
        %v986 = vadd.f32 %v837, %v985
        %987 = vdwg.mxu0
        %s988 = scalar_lea.vmem %s369, 32 [#allocation2]
        %v989 = vld [vmem:[%s988] sm:$0xff]
        %v990 = vld [vmem:[%s988 + $0x8] sm:$0xff]
        %v991 = vld [vmem:[%s988 + $0x10] sm:$0xff]
        %v992 = vld [vmem:[%s988 + $0x18] sm:$0xff]
        %v993 = vadd.f32 %v979, %v989
        %v994 = vadd.f32 %v981, %v990
        %v995 = vadd.f32 %v984, %v991
        %v996 = vadd.f32 %v986, %v992
        %s997 = scalar_lea.vmem %s401, 32 [#allocation3]
        %998 = vst.msk [vmem:[%s997] sm:$0xff] %vm857, %v993
        %999 = vst.msk [vmem:[%s997 + $0x8] sm:$0xff] %vm857, %v994
        %1000 = vst.msk [vmem:[%s997 + $0x10] sm:$0xff] %vm857, %v995
        %1001 = vst.msk [vmem:[%s997 + $0x18] sm:$0xff] %vm857, %v996
        %v1010 = vrot.slane %v722, 1
        %v1011 = vrot.slane %v738, 1
        %v1012 = vsel %vm765, %v1010, %v1011
        %v1013 = vrot.slane %v726, 1
        %v1014 = vrot.slane %v742, 1
        %v1015 = vsel %vm765, %v1013, %v1014
        %v1016 = vrot.slane %v730, 1
        %v1017 = vrot.slane %v746, 1
        %v1018 = vsel %vm765, %v1016, %v1017
        %v1019 = vrot.slane %v734, 1
        %v1020 = vrot.slane %v750, 1
        %v1021 = vsel %vm765, %v1019, %v1020
        %1022 = vrot.lane.b32.xlu0 %v1012, 64
        %v1023 = vpop.permute.xlu0 %1022
        %1024 = vrot.lane.b32.xlu0 %v1015, 64
        %v1025 = vpop.permute.xlu0 %1024
        %1026 = vrot.lane.b32.xlu0 %v1018, 64
        %v1027 = vpop.permute.xlu0 %1026
        %1028 = vrot.lane.b32.xlu0 %v1021, 64
        %v1029 = vpop.permute.xlu0 %1028
        %v1034 = vadd.f32 %v722, %v1023
        %v1035 = vadd.f32 %v726, %v1025
        %v1036 = vadd.f32 %v730, %v1027
        %v1037 = vadd.f32 %v734, %v1029
        %v1038 = vadd.f32 %v1034, %v724
        %v1039 = vadd.f32 %v1035, %v728
        %v1040 = vadd.f32 %v1036, %v732
        %v1041 = vadd.f32 %v1037, %v735
        %v1050 = vrot.slane %v724, 1
        %v1051 = vrot.slane %v740, 1
        %v1052 = vsel %vm765, %v1050, %v1051
        %v1053 = vrot.slane %v728, 1
        %v1054 = vrot.slane %v744, 1
        %v1055 = vsel %vm765, %v1053, %v1054
        %v1056 = vrot.slane %v732, 1
        %v1057 = vrot.slane %v748, 1
        %v1058 = vsel %vm765, %v1056, %v1057
        %v1059 = vrot.slane %v735, 1
        %v1060 = vrot.slane %v751, 1
        %v1061 = vsel %vm765, %v1059, %v1060
        %1062 = vrot.lane.b32.xlu0 %v1052, 64
        %v1063 = vpop.permute.xlu0 %1062
        %1064 = vrot.lane.b32.xlu0 %v1055, 64
        %v1065 = vpop.permute.xlu0 %1064
        %1066 = vrot.lane.b32.xlu0 %v1058, 64
        %v1067 = vpop.permute.xlu0 %1066
        %1068 = vrot.lane.b32.xlu0 %v1061, 64
        %v1069 = vpop.permute.xlu0 %1068
        %v1074 = vadd.f32 %v1038, %v1063
        %v1075 = vadd.f32 %v1039, %v1065
        %v1076 = vadd.f32 %v1040, %v1067
        %v1077 = vadd.f32 %v1041, %v1069
        %v1078 = vpack.c.bf16 %v1075, %v1074
        %v1079 = vpack.c.bf16 %v1077, %v1076
        %1082 = vrot.lane.b32.xlu0 %v1078, 32
        %v1083 = vpop.permute.xlu0 %1082
        %1084 = vrot.lane.b32.xlu0 %v1079, 32
        %v1085 = vpop.permute.xlu0 %1084
        %v1087 = vsel %vm857, %v1083, 0
        %v1090 = vsel %vm857, %v1085, 0
        %1092 = vmatpush.bf16.msra.mxu0 0
        %1093 = vmatpush.bf16.msra.mxu0 0
        %1094 = vmatpush.bf16.msra.mxu0 0
        %1095 = vmatpush.bf16.msra.mxu0 0
        %1096 = vmatpush.bf16.msra.mxu0 0
        %1097 = vmatpush.bf16.msra.mxu0 0
        %1098 = vmatpush.bf16.msra.mxu0 %v854
        %1099 = vmatpush.bf16.msra.mxu0 %v853
        %1100 = vmatmul.bf16.gmra.mxu0 %v1087
        %v1101 = vpop.f32.mrf.mxu0
        %v1102 = vadd.f32 %v837, %v1101
        %v1103 = vpop.f32.mrf.mxu0
        %v1104 = vadd.f32 %v837, %v1103
        %1105 = vmatmul.bf16.gmra.mxu0 %v1090
        %v1106 = vpop.f32.mrf.mxu0
        %v1107 = vadd.f32 %v837, %v1106
        %v1108 = vpop.f32.mrf.mxu0
        %v1109 = vadd.f32 %v837, %v1108
        %1110 = vdwg.mxu0
        %s1111 = scalar_lea.vmem %s369, 64 [#allocation2]
        %v1112 = vld [vmem:[%s1111] sm:$0xff]
        %v1113 = vld [vmem:[%s1111 + $0x8] sm:$0xff]
        %v1114 = vld [vmem:[%s1111 + $0x10] sm:$0xff]
        %v1115 = vld [vmem:[%s1111 + $0x18] sm:$0xff]
        %v1116 = vadd.f32 %v1102, %v1112
        %v1117 = vadd.f32 %v1104, %v1113
        %v1118 = vadd.f32 %v1107, %v1114
        %v1119 = vadd.f32 %v1109, %v1115
        %s1120 = scalar_lea.vmem %s401, 64 [#allocation3]
        %1121 = vst.msk [vmem:[%s1120] sm:$0xff] %vm857, %v1116
        %1122 = vst.msk [vmem:[%s1120 + $0x8] sm:$0xff] %vm857, %v1117
        %1123 = vst.msk [vmem:[%s1120 + $0x10] sm:$0xff] %vm857, %v1118
        %1124 = vst.msk [vmem:[%s1120 + $0x18] sm:$0xff] %vm857, %v1119
        %1125 = vrot.lane.b32.xlu0 %v1011, 64
        %v1126 = vpop.permute.xlu0 %1125
        %1127 = vrot.lane.b32.xlu0 %v1014, 64
        %v1128 = vpop.permute.xlu0 %1127
        %1129 = vrot.lane.b32.xlu0 %v1017, 64
        %v1130 = vpop.permute.xlu0 %1129
        %1131 = vrot.lane.b32.xlu0 %v1020, 64
        %v1132 = vpop.permute.xlu0 %1131
        %v1137 = vadd.f32 %v738, %v1126
        %v1138 = vadd.f32 %v742, %v1128
        %v1139 = vadd.f32 %v746, %v1130
        %v1140 = vadd.f32 %v750, %v1132
        %v1141 = vadd.f32 %v1137, %v740
        %v1142 = vadd.f32 %v1138, %v744
        %v1143 = vadd.f32 %v1139, %v748
        %v1144 = vadd.f32 %v1140, %v751
        %1145 = vrot.lane.b32.xlu0 %v1051, 64
        %v1146 = vpop.permute.xlu0 %1145
        %1147 = vrot.lane.b32.xlu0 %v1054, 64
        %v1148 = vpop.permute.xlu0 %1147
        %1149 = vrot.lane.b32.xlu0 %v1057, 64
        %v1150 = vpop.permute.xlu0 %1149
        %1151 = vrot.lane.b32.xlu0 %v1060, 64
        %v1152 = vpop.permute.xlu0 %1151
        %v1157 = vadd.f32 %v1141, %v1146
        %v1158 = vadd.f32 %v1142, %v1148
        %v1159 = vadd.f32 %v1143, %v1150
        %v1160 = vadd.f32 %v1144, %v1152
        %v1169 = vrot.slane %v1074, 1
        %v1170 = vrot.slane %v1157, 1
        %v1171 = vsel %vm765, %v1169, %v1170
        %v1172 = vrot.slane %v1075, 1
        %v1173 = vrot.slane %v1158, 1
        %v1174 = vsel %vm765, %v1172, %v1173
        %v1175 = vrot.slane %v1076, 1
        %v1176 = vrot.slane %v1159, 1
        %v1177 = vsel %vm765, %v1175, %v1176
        %v1178 = vrot.slane %v1077, 1
        %v1179 = vrot.slane %v1160, 1
        %v1180 = vsel %vm765, %v1178, %v1179
        %v1185 = vpack.c.bf16 %v1174, %v1171
        %v1186 = vpack.c.bf16 %v1180, %v1177
        %1189 = vrot.lane.b32.xlu0 %v1185, 64
        %v1190 = vpop.permute.xlu0 %1189
        %1191 = vrot.lane.b32.xlu0 %v1186, 64
        %v1192 = vpop.permute.xlu0 %1191
        %v1194 = vsel %vm857, %v1190, 0
        %v1197 = vsel %vm857, %v1192, 0
        %1199 = vmatpush.bf16.msra.mxu0 0
        %1200 = vmatpush.bf16.msra.mxu0 0
        %1201 = vmatpush.bf16.msra.mxu0 0
        %1202 = vmatpush.bf16.msra.mxu0 0
        %1203 = vmatpush.bf16.msra.mxu0 0
        %1204 = vmatpush.bf16.msra.mxu0 0
        %1205 = vmatpush.bf16.msra.mxu0 %v854
        %1206 = vmatpush.bf16.msra.mxu0 %v853
        %1207 = vmatmul.bf16.gmra.mxu0 %v1194
        %v1208 = vpop.f32.mrf.mxu0
        %v1209 = vadd.f32 %v837, %v1208
        %v1210 = vpop.f32.mrf.mxu0
        %v1211 = vadd.f32 %v837, %v1210
        %1212 = vmatmul.bf16.gmra.mxu0 %v1197
        %v1213 = vpop.f32.mrf.mxu0
        %v1214 = vadd.f32 %v837, %v1213
        %v1215 = vpop.f32.mrf.mxu0
        %v1216 = vadd.f32 %v837, %v1215
        %1217 = vdwg.mxu0
        %s1218 = scalar_lea.vmem %s369, 96 [#allocation2]
        %v1219 = vld [vmem:[%s1218] sm:$0xff]
        %v1220 = vld [vmem:[%s1218 + $0x8] sm:$0xff]
        %v1221 = vld [vmem:[%s1218 + $0x10] sm:$0xff]
        %v1222 = vld [vmem:[%s1218 + $0x18] sm:$0xff]
        %v1223 = vadd.f32 %v1209, %v1219
        %v1224 = vadd.f32 %v1211, %v1220
        %v1225 = vadd.f32 %v1214, %v1221
        %v1226 = vadd.f32 %v1216, %v1222
        %s1227 = scalar_lea.vmem %s401, 96 [#allocation3]
        %1228 = vst.msk [vmem:[%s1227] sm:$0xff] %vm857, %v1223
        %1229 = vst.msk [vmem:[%s1227 + $0x8] sm:$0xff] %vm857, %v1224
        %1230 = vst.msk [vmem:[%s1227 + $0x10] sm:$0xff] %vm857, %v1225
        %1231 = vst.msk [vmem:[%s1227 + $0x18] sm:$0xff] %vm857, %v1226
        %s1232 = sand.u32 %s199, 1
        %s1233 = sand.u32 %s199, 1
        %s1234 = smul.addr %s1233, 128
        %s1235 = scalar_lea.vmem [#allocation3], %s1234
        // Predicated region
        $region87: #{decoder_block_forward.1} parent=81 // pred_check
          %p1236 = pneg %p209
        $region88: #{decoder_block_forward.1} parent=81 // pred_check_branch
          %1238 = sbr.rel (%p1236) target = $region90
        $region89: #{decoder_block_forward.1} parent=81 // pred_region
          %s1239 = smul.u32 4, %s23
          %s1240 = smul.addr %s22, 32
          %s1241 = sadd.s32 %s1239, %s1240
          %s1242 = smul.addr %s1241, 8
          %s1243 = scalar_lea.vmem %s7, %s1242
          // Predicated region
          $region91: #{decoder_block_forward.1} parent=89 // pred_check
            _
          $region92: #{decoder_block_forward.1} parent=89 // pred_check_branch
            %1245 = sbr.rel (0) target = $region94
          $region93: #{decoder_block_forward.1} parent=89 // pred_region
            // Predicated region
            $region95: #{decoder_block_forward.1} parent=93 // pred_check
              _
            $region96: #{decoder_block_forward.1} parent=93 // pred_check_branch
              %1247 = sbr.rel (0) target = $region98
            $region97: #{decoder_block_forward.1} parent=93 // pred_region
              // Predicated region
              $region110: #{decoder_block_forward.1} parent=97 // pred_check
                _
              $region111: #{decoder_block_forward.1} parent=97 // pred_check_branch
                %1293 = sbr.rel (0) target = $region113
              $region112: #{decoder_block_forward.1} parent=97 // pred_region
                loop: start=0, step=1, limit=1
                $region114: #{decoder_block_forward.1} parent=112 // loop_pre_header
                  _
                $region115: #{decoder_block_forward.1} parent=112 // loop_header
                  %s1295 = sphi 0, %s1299
                  %p1296 = scmp.ge.s32.totalorder %s1295, 1
                  %s1300 = sphi %s1235, %s1235
                  %s1301 = sphi %s1243, %s1243
                $region116: #{decoder_block_forward.1} parent=112 // loop_header_branch
                  %1298 = sbr.rel (%p1296) target = $region120
                $region117: #{decoder_block_forward.1} parent=112 // loop_body
                  %v1302 = vld [vmem:[%s1300] sm:$0xff]
                  %1303 = vst [vmem:[%s1301] sm:$0xff] %v1302
                  %v1304 = vld [vmem:[%s1300 + $0x8] sm:$0xff]
                  %1305 = vst [vmem:[%s1301 + $0x8] sm:$0xff] %v1304
                  %v1306 = vld [vmem:[%s1300 + $0x10] sm:$0xff]
                  %1307 = vst [vmem:[%s1301 + $0x10] sm:$0xff] %v1306
                  %v1308 = vld [vmem:[%s1300 + $0x18] sm:$0xff]
                  %1309 = vst [vmem:[%s1301 + $0x18] sm:$0xff] %v1308
                  %v1310 = vld [vmem:[%s1300 + $0x20] sm:$0xff]
                  %1311 = vst [vmem:[%s1301 + $0x40] sm:$0xff] %v1310
                  %v1312 = vld [vmem:[%s1300 + $0x28] sm:$0xff]
                  %1313 = vst [vmem:[%s1301 + $0x48] sm:$0xff] %v1312
                  %v1314 = vld [vmem:[%s1300 + $0x30] sm:$0xff]
                  %1315 = vst [vmem:[%s1301 + $0x50] sm:$0xff] %v1314
                  %v1316 = vld [vmem:[%s1300 + $0x38] sm:$0xff]
                  %1317 = vst [vmem:[%s1301 + $0x58] sm:$0xff] %v1316
                  %v1318 = vld [vmem:[%s1300 + $0x40] sm:$0xff]
                  %1319 = vst [vmem:[%s1301 + $0x80] sm:$0xff] %v1318
                  %v1320 = vld [vmem:[%s1300 + $0x48] sm:$0xff]
                  %1321 = vst [vmem:[%s1301 + $0x88] sm:$0xff] %v1320
                  %v1322 = vld [vmem:[%s1300 + $0x50] sm:$0xff]
                  %1323 = vst [vmem:[%s1301 + $0x90] sm:$0xff] %v1322
                  %v1324 = vld [vmem:[%s1300 + $0x58] sm:$0xff]
                  %1325 = vst [vmem:[%s1301 + $0x98] sm:$0xff] %v1324
                  %v1326 = vld [vmem:[%s1300 + $0x60] sm:$0xff]
                  %1327 = vst [vmem:[%s1301 + $0xc0] sm:$0xff] %v1326
                  %v1328 = vld [vmem:[%s1300 + $0x68] sm:$0xff]
                  %1329 = vst [vmem:[%s1301 + $0xc8] sm:$0xff] %v1328
                  %v1330 = vld [vmem:[%s1300 + $0x70] sm:$0xff]
                  %1331 = vst [vmem:[%s1301 + $0xd0] sm:$0xff] %v1330
                  %v1332 = vld [vmem:[%s1300 + $0x78] sm:$0xff]
                  %1333 = vst [vmem:[%s1301 + $0xd8] sm:$0xff] %v1332
                $region118: #{decoder_block_forward.1} parent=112 // loop_footer
                  %s1299 = sadd.s32 1, %s1295
                $region119: #{decoder_block_forward.1} parent=112 // loop_footer_branch
                  %1294 = sbr.rel target = $region115
                $region120: #{decoder_block_forward.1} parent=112 // loop_exit
                  _
              $region113: #{decoder_block_forward.1} parent=97 // pred_fallthru
                _
              // Predicated region
              $region121: #{decoder_block_forward.1} parent=97 // pred_check
                _
              $region122: #{decoder_block_forward.1} parent=97 // pred_check_branch
                %1335 = sbr.rel target = $region124
              $region123: #{decoder_block_forward.1} parent=97 // pred_region
                _
              $region124: #{decoder_block_forward.1} parent=97 // pred_fallthru
                _
            $region98: #{decoder_block_forward.1} parent=93 // pred_fallthru
              _
            // Predicated region
            $region99: #{decoder_block_forward.1} parent=93 // pred_check
              _
            $region100: #{decoder_block_forward.1} parent=93 // pred_check_branch
              %1249 = sbr.rel target = $region102
            $region101: #{decoder_block_forward.1} parent=93 // pred_region
              %s1251 = ssub.s32 256, 1
              loop: start=0, step=1, limit=1
              $region103: #{decoder_block_forward.1} parent=101 // loop_pre_header
                _
              $region104: #{decoder_block_forward.1} parent=101 // loop_header
                %s1253 = sphi 0, %s1257
                %p1254 = scmp.ge.s32.totalorder %s1253, 1
                %s1258 = sphi %s1235, %s1235
                %s1259 = sphi %s1243, %s1243
              $region105: #{decoder_block_forward.1} parent=101 // loop_header_branch
                %1256 = sbr.rel (%p1254) target = $region109
              $region106: #{decoder_block_forward.1} parent=101 // loop_body
                %v1260 = vld [vmem:[%s1258] sm:%s1251]
                %1261 = vst [vmem:[%s1259] sm:%s1251] %v1260
                %v1262 = vld [vmem:[%s1258 + $0x8] sm:%s1251]
                %1263 = vst [vmem:[%s1259 + $0x8] sm:%s1251] %v1262
                %v1264 = vld [vmem:[%s1258 + $0x10] sm:%s1251]
                %1265 = vst [vmem:[%s1259 + $0x10] sm:%s1251] %v1264
                %v1266 = vld [vmem:[%s1258 + $0x18] sm:%s1251]
                %1267 = vst [vmem:[%s1259 + $0x18] sm:%s1251] %v1266
                %v1268 = vld [vmem:[%s1258 + $0x20] sm:%s1251]
                %1269 = vst [vmem:[%s1259 + $0x40] sm:%s1251] %v1268
                %v1270 = vld [vmem:[%s1258 + $0x28] sm:%s1251]
                %1271 = vst [vmem:[%s1259 + $0x48] sm:%s1251] %v1270
                %v1272 = vld [vmem:[%s1258 + $0x30] sm:%s1251]
                %1273 = vst [vmem:[%s1259 + $0x50] sm:%s1251] %v1272
                %v1274 = vld [vmem:[%s1258 + $0x38] sm:%s1251]
                %1275 = vst [vmem:[%s1259 + $0x58] sm:%s1251] %v1274
                %v1276 = vld [vmem:[%s1258 + $0x40] sm:%s1251]
                %1277 = vst [vmem:[%s1259 + $0x80] sm:%s1251] %v1276
                %v1278 = vld [vmem:[%s1258 + $0x48] sm:%s1251]
                %1279 = vst [vmem:[%s1259 + $0x88] sm:%s1251] %v1278
                %v1280 = vld [vmem:[%s1258 + $0x50] sm:%s1251]
                %1281 = vst [vmem:[%s1259 + $0x90] sm:%s1251] %v1280
                %v1282 = vld [vmem:[%s1258 + $0x58] sm:%s1251]
                %1283 = vst [vmem:[%s1259 + $0x98] sm:%s1251] %v1282
                %v1284 = vld [vmem:[%s1258 + $0x60] sm:%s1251]
                %1285 = vst [vmem:[%s1259 + $0xc0] sm:%s1251] %v1284
                %v1286 = vld [vmem:[%s1258 + $0x68] sm:%s1251]
                %1287 = vst [vmem:[%s1259 + $0xc8] sm:%s1251] %v1286
                %v1288 = vld [vmem:[%s1258 + $0x70] sm:%s1251]
                %1289 = vst [vmem:[%s1259 + $0xd0] sm:%s1251] %v1288
                %v1290 = vld [vmem:[%s1258 + $0x78] sm:%s1251]
                %1291 = vst [vmem:[%s1259 + $0xd8] sm:%s1251] %v1290
              $region107: #{decoder_block_forward.1} parent=101 // loop_footer
                %s1257 = sadd.s32 1, %s1253
              $region108: #{decoder_block_forward.1} parent=101 // loop_footer_branch
                %1252 = sbr.rel target = $region104
              $region109: #{decoder_block_forward.1} parent=101 // loop_exit
                _
            $region102: #{decoder_block_forward.1} parent=93 // pred_fallthru
              _
          $region94: #{decoder_block_forward.1} parent=89 // pred_fallthru
            _
          %1336 = vnop
        $region90: #{decoder_block_forward.1} parent=81 // pred_fallthru
          _
      $region82: #{decoder_block_forward.1} parent=5 // pred_fallthru
        _
      %p1337 = scmp.le.s32.totalorder 2, %s13
      // Predicated region
      $region125: #{decoder_block_forward.1} parent=5 // pred_check
        %p1338 = pneg %p1337
      $region126: #{decoder_block_forward.1} parent=5 // pred_check_branch
        %1340 = sbr.rel (%p1338) target = $region128
      $region127: #{decoder_block_forward.1} parent=5 // pred_region
        %s1341 = ssub.s32 %s13, 2
        // Predicated region
        $region129: #{decoder_block_forward.1} parent=127 // pred_check
          %p1342 = pneg %p215
        $region130: #{decoder_block_forward.1} parent=127 // pred_check_branch
          %1344 = sbr.rel (%p1342) target = $region132
        $region131: #{decoder_block_forward.1} parent=127 // pred_region
          %s1345 = sand.u32 %s200, 1
          %s1346 = sand.u32 %s200, 1
          %s1347 = smul.addr %s1346, 128
          %s1348 = scalar_lea.vmem [#allocation3], %s1347
        $region132: #{decoder_block_forward.1} parent=127 // pred_fallthru
          _
      $region128: #{decoder_block_forward.1} parent=5 // pred_fallthru
        _
    $region6: #{decoder_block_forward.1} parent=1 // loop_footer
      %s17 = sadd.s32 1, %s13
    $region7: #{decoder_block_forward.1} parent=1 // loop_footer_branch
      %12 = sbr.rel target = $region3
    $region8: #{decoder_block_forward.1} parent=1 // loop_exit
      _

</llo_original>
